<compile_context>
chip_gen: v5e
topology: v5e:2x2
jax: 0.10.0
libtpu: 0.0.40
codegen_flags: <defaults>
</compile_context>

<pallas_src>
import jax
import jax.numpy as jnp
from jax.experimental import pallas as pl
from jax.experimental.pallas import tpu as pltpu


def _make_coattn_kernel(TQ, N, N_pad, C, mxu_dtype):
    mxu_dtype = jnp.dtype(mxu_dtype)
    is_bf16 = (mxu_dtype == jnp.bfloat16)
    exp_dtype = jnp.bfloat16 if is_bf16 else jnp.float32
    approx_recip = is_bf16

    def kernel(xl_ref, xr_ref, kr_ref, kl_ref, wq_ref, bq_ref,
               out_r_ref, out_l_ref):
        # xl_ref / xr_ref : (1, C_aug, N_pad)  features (channels-first) with a ones
        #                   row at channel index C (fused softmax denominator).
        # kr_ref / kl_ref : (1, hidden, N_pad) hoisted K projections (right / left).
        # wq_ref          : (hidden, C_aug)    query 1x1-conv weights (zero-padded cols).
        # bq_ref          : (hidden, 1)        query bias (f32).
        # out_r_ref       : (1, C, TQ)  attended right features (query = left tile).
        # out_l_ref       : (1, C, TQ)  attended left features  (query = right tile).
        qi = pl.program_id(1)
        q0 = pl.multiple_of(qi * TQ, TQ)

        wq = wq_ref[...]                            # (hidden, C_aug) mxu dtype
        bq = bq_ref[...]                            # (hidden, 1) f32

        xl_q = xl_ref[0, :, pl.ds(q0, TQ)]          # (C_aug, TQ)
        xr_q = xr_ref[0, :, pl.ds(q0, TQ)]          # (C_aug, TQ)

        # Fused Q projection for both directions: one wide matmul, then split.
        q_both = jnp.dot(wq, jnp.concatenate([xl_q, xr_q], axis=1),
                         preferred_element_type=jnp.float32) + bq   # (hidden, 2*TQ)
        q_l = q_both[:, :TQ].astype(mxu_dtype)
        q_r = q_both[:, TQ:].astype(mxu_dtype)

        def one_direction(q, k_all, v_aug, out_ref):
            # q: (hidden, TQ); k_all: (hidden, N_pad); v_aug: (C_aug, N_pad).
            # Scores: contract the hidden axis directly (no explicit transpose).
            s = jax.lax.dot_general(
                q, k_all, dimension_numbers=(((0,), (0,)), ((), ())),
                preferred_element_type=jnp.float32)                  # (TQ, N_pad)
            if N_pad != N:
                col = jax.lax.broadcasted_iota(jnp.int32, s.shape, 1)
                s = jnp.where(col < N, s, jnp.float32(-1e30))        # mask padded KV
            m = jnp.max(s, axis=-1, keepdims=True)                   # (TQ, 1) f32
            e = jnp.exp((s - m).astype(exp_dtype)).astype(mxu_dtype)  # (TQ, N_pad)
            # Fused PV + denominator: v_aug carries a ones row at channel index C,
            # so o_aug[C] holds the unnormalized softmax row-sums.
            o_aug = jax.lax.dot_general(
                v_aug, e, dimension_numbers=(((1,), (1,)), ((), ())),
                preferred_element_type=jnp.float32)                   # (C_aug, TQ)
            denom = o_aug[C:C + 1, :]                                 # (1, TQ)
            o = o_aug[:C, :] * pl.reciprocal(denom, approx=approx_recip)
            out_ref[0] = o.astype(out_ref.dtype)

        # weighted_r: query = left tile, reference = right features.
        one_direction(q_l, kr_ref[0], xr_ref[0], out_r_ref)
        # weighted_l: query = right tile, reference = left features.
        one_direction(q_r, kl_ref[0], xl_ref[0], out_l_ref)

    return kernel


def coattention_pallas(xl, xr, wq, bq, wk, bk, *, mxu_dtype=None):
    """Fused co-attention (both directions) on flattened features.

    xl, xr: (B, C, N) channels-first features; wq/wk: (hidden, C); bq/bk: (hidden, 1).
    Returns (weighted_r, weighted_l), each (B, C, N) in the input dtype.
    """
    B, C, N = xl.shape
    hidden = wq.shape[0]
    out_dtype = xl.dtype
    if mxu_dtype is None:
        mxu_dtype = xl.dtype
    mxu_dtype = jnp.dtype(mxu_dtype)
    ms = mxu_dtype.itemsize
    os = jnp.dtype(out_dtype).itemsize

    # Generation-aware VMEM budget.
    try:
        vmem_cap = int(pltpu.get_tpu_info().vmem_capacity_bytes)
    except Exception:  # pragma: no cover - conservative fallback (v7x-sized)
        vmem_cap = 64 * 1024 * 1024
    vmem_budget = int(0.75 * vmem_cap)

    C_aug = ((C + 1 + 7) // 8) * 8                  # V channels + ones row, sublane-padded

    def vmem_estimate(tq, n_pad):
        feats = 2 * 2 * C_aug * n_pad * ms          # xl_aug / xr_aug (double-buffered)
        keys = 2 * 2 * hidden * n_pad * ms          # kr / kl (double-buffered)
        wgt = 2 * (hidden * C_aug * ms + hidden * 4)
        outs = 2 * 2 * C * tq * os                  # both outputs (double-buffered)
        temps = (2 * (tq * n_pad * 4 + tq * n_pad * ms + C_aug * tq * 4)
                 + hidden * 2 * tq * 4 + C_aug * 2 * tq * ms)
        return feats + keys + wgt + outs + temps

    # Query-tile selection: 256 on 256-aligned N when the estimate fits (v6e/v7x MXU is
    # 256-wide and halves grid-step overhead); otherwise 128 with lane padding of N.
    if N % 256 == 0 and vmem_estimate(256, N) <= vmem_budget:
        TQ = 256
    else:
        TQ = 128
    N_pad = ((N + TQ - 1) // TQ) * TQ
    nq = N_pad // TQ

    est = vmem_estimate(TQ, N_pad)
    vmem_limit = int(min(vmem_budget, max(32 * 1024 * 1024, int(1.5 * est))))

    # --- Host-side prep (cheap XLA ops, no transposes) ---------------------------
    # Hoisted K projections (1x1 conv) for both directions.
    kr = jnp.einsum("oc,bcn->bon", wk, xr) + bk[None]      # (B, hidden, N)
    kl = jnp.einsum("oc,bcn->bon", wk, xl) + bk[None]

    if N_pad != N:
        pad_n = ((0, 0), (0, 0), (0, N_pad - N))
        xl_p, xr_p = jnp.pad(xl, pad_n), jnp.pad(xr, pad_n)
        kr, kl = jnp.pad(kr, pad_n), jnp.pad(kl, pad_n)
    else:
        xl_p, xr_p = xl, xr

    def augment(x):
        # Pad channels to C_aug and install the ones row (fused softmax denominator).
        x = jnp.pad(x, ((0, 0), (0, C_aug - C), (0, 0)))
        x = x.at[:, C, :].set(jnp.asarray(1.0, x.dtype))
        return x.astype(mxu_dtype)

    xl_aug, xr_aug = augment(xl_p), augment(xr_p)
    kr, kl = kr.astype(mxu_dtype), kl.astype(mxu_dtype)
    wq_aug = jnp.zeros((hidden, C_aug), mxu_dtype).at[:, :C].set(wq.astype(mxu_dtype))
    bq = bq.astype(jnp.float32)

    kernel = _make_coattn_kernel(TQ, N, N_pad, C, mxu_dtype)

    out_r, out_l = pl.pallas_call(
        kernel,
        out_shape=(jax.ShapeDtypeStruct((B, C, N_pad), out_dtype),
                   jax.ShapeDtypeStruct((B, C, N_pad), out_dtype)),
        grid_spec=pltpu.PrefetchScalarGridSpec(
            num_scalar_prefetch=0,
            grid=(B, nq),
            in_specs=[
                pl.BlockSpec((1, C_aug, N_pad), lambda b, q: (b, 0, 0)),
                pl.BlockSpec((1, C_aug, N_pad), lambda b, q: (b, 0, 0)),
                pl.BlockSpec((1, hidden, N_pad), lambda b, q: (b, 0, 0)),
                pl.BlockSpec((1, hidden, N_pad), lambda b, q: (b, 0, 0)),
                pl.BlockSpec((hidden, C_aug), lambda b, q: (0, 0)),
                pl.BlockSpec((hidden, 1), lambda b, q: (0, 0)),
            ],
            out_specs=(
                pl.BlockSpec((1, C, TQ), lambda b, q: (b, 0, q)),
                pl.BlockSpec((1, C, TQ), lambda b, q: (b, 0, q)),
            ),
        ),
        compiler_params=pltpu.CompilerParams(
            # No cross-iteration state: both axes are independent, so the grid can
            # shard across the two TensorCores on v7x (no-op on v5e/v6e).
            dimension_semantics=("parallel", "parallel"),
            vmem_limit_bytes=vmem_limit,
        ),
    )(xl_aug, xr_aug, kr, kl, wq_aug, bq)

    if N_pad != N:
        out_r = out_r[:, :, :N]
        out_l = out_l[:, :, :N]
    return out_r, out_l


def init_params(key, input_channels, hidden_channels):
    kq_w, kq_b, kr_w, kr_b = jax.random.split(key, 4)
    # Conv2d(input_channels, hidden_channels, kernel_size=1) weights: (hidden, C, 1, 1)
    scale = 1.0 / jnp.sqrt(input_channels)
    return {
        "query_w": jax.random.uniform(kq_w, (hidden_channels, input_channels, 1, 1),
                                      jnp.float32, -scale, scale),
        "query_b": jax.random.uniform(kq_b, (hidden_channels,), jnp.float32, -scale, scale),
        "reference_w": jax.random.uniform(kr_w, (hidden_channels, input_channels, 1, 1),
                                          jnp.float32, -scale, scale),
        "reference_b": jax.random.uniform(kr_b, (hidden_channels,), jnp.float32, -scale, scale),
    }


def coattention_module_forward(left_features, right_features, params, *, mxu_dtype=None):
    """CoAttentionModule.forward with attention_type='coam'. Inputs NCHW."""
    B, C, H, W = left_features.shape
    N = H * W

    # Channels-first flatten: pure reshape, no transpose (N lands on the lane axis).
    xl = left_features.reshape(B, C, N)
    xr = right_features.reshape(B, C, N)

    wq = params["query_w"][:, :, 0, 0]          # (hidden, C)
    wk = params["reference_w"][:, :, 0, 0]      # (hidden, C)
    bq = params["query_b"][:, None]             # (hidden, 1)
    bk = params["reference_b"][:, None]         # (hidden, 1)

    # One fused kernel launch produces both directions.
    weighted_r_flat, weighted_l_flat = coattention_pallas(
        xl, xr, wq, bq, wk, bk, mxu_dtype=mxu_dtype)

    weighted_r = weighted_r_flat.reshape(B, C, H, W)
    weighted_l = weighted_l_flat.reshape(B, C, H, W)

    # rearrange([x, w], 'two b c h w -> b (two c) h w') == concat along channels
    left_attended = jnp.concatenate([left_features, weighted_r], axis=1)
    right_attended = jnp.concatenate([right_features, weighted_l], axis=1)
    return left_attended, right_attended


def _reference_forward(left, right, params):
    """Pure-JAX reference of CoAttentionModule.forward for validation."""
    wq = params["query_w"][:, :, 0, 0]       # (hidden, C)
    wk = params["reference_w"][:, :, 0, 0]
    bq = params["query_b"]
    bk = params["reference_b"]

    def layer(query, reference):
        B, C, H, W = query.shape
        Q = jnp.einsum("bchw,oc->bohw", query, wq) + bq[None, :, None, None]
        K = jnp.einsum("bchw,oc->bohw", reference, wk) + bk[None, :, None, None]
        V = reference.reshape(B, C, H * W)
        att = jnp.einsum("bcij,bckl->bijkl", Q, K).reshape(B, H, W, H * W)
        att = jax.nn.softmax(att, axis=3)
        return jnp.einsum("bijp,bcp->bcij", att, V)

    weighted_r = layer(left, right)
    weighted_l = layer(right, left)
    return (jnp.concatenate([left, weighted_r], axis=1),
            jnp.concatenate([right, weighted_l], axis=1))


if __name__ == "__main__":
    key = jax.random.PRNGKey(0)
    k_params, k_left, k_right = jax.random.split(key, 3)

    # --- Config 1: 256-aligned spatial map (TQ=256 path, no padding) -------------
    B, C_IN, HID, H, W = 2, 32, 16, 16, 16      # N = 256
    params = init_params(k_params, C_IN, HID)
    left = jax.random.normal(k_left, (B, C_IN, H, W), jnp.float32)
    right = jax.random.normal(k_right, (B, C_IN, H, W), jnp.float32)

    left_out, right_out = coattention_module_forward(left, right, params)
    jax.block_until_ready((left_out, right_out))

    ref_left, ref_right = _reference_forward(left, right, params)
    assert left_out.shape == (B, 2 * C_IN, H, W)
    assert right_out.shape == (B, 2 * C_IN, H, W)
    assert jnp.allclose(left_out, ref_left, atol=1e-4, rtol=1e-4)
    assert jnp.allclose(right_out, ref_right, atol=1e-4, rtol=1e-4)

    # bf16-MXU path (host-side bf16 conversion, bf16 exp, approx reciprocal).
    left_bf, right_bf = coattention_module_forward(left, right, params,
                                                   mxu_dtype=jnp.bfloat16)
    jax.block_until_ready((left_bf, right_bf))
    assert float(jnp.max(jnp.abs(left_bf - ref_left))) < 0.3
    assert float(jnp.max(jnp.abs(right_bf - ref_right))) < 0.3

    # --- Config 2: non-128-aligned spatial map (padding + masked softmax path) ---
    H2 = W2 = 20                                 # N = 400 -> padded to 512, TQ = 128
    left2 = jax.random.normal(k_left, (B, C_IN, H2, W2), jnp.float32)
    right2 = jax.random.normal(k_right, (B, C_IN, H2, W2), jnp.float32)
    left2_out, right2_out = coattention_module_forward(left2, right2, params)
    jax.block_until_ready((left2_out, right2_out))
    ref_left2, ref_right2 = _reference_forward(left2, right2, params)
    assert left2_out.shape == (B, 2 * C_IN, H2, W2)
    assert jnp.allclose(left2_out, ref_left2, atol=1e-4, rtol=1e-4)
    assert jnp.allclose(right2_out, ref_right2, atol=1e-4, rtol=1e-4)

    print("KERNEL_OK")
</pallas_src>

<mosaic_0001>
module attributes {stable_mosaic.version = 11 : i64} {
  func.func @kernel(%arg0: i32, %arg1: i32, %arg2: memref<1x40x256xf32, #tpu.memory_space<vmem>>, %arg3: memref<1x40x256xf32, #tpu.memory_space<vmem>>, %arg4: memref<1x16x256xf32, #tpu.memory_space<vmem>>, %arg5: memref<1x16x256xf32, #tpu.memory_space<vmem>>, %arg6: memref<16x40xf32, #tpu.memory_space<vmem>>, %arg7: memref<16x1xf32, #tpu.memory_space<vmem>>, %arg8: memref<1x32x256xf32, #tpu.memory_space<vmem>>, %arg9: memref<1x32x256xf32, #tpu.memory_space<vmem>>) attributes {dimension_semantics = [#tpu.dimension_semantics<parallel>, #tpu.dimension_semantics<parallel>], iteration_bounds = array<i64: 2, 1>, scalar_prefetch = 0 : i64, scratch_operands = 0 : i64, tpu.core_type = #tpu.core_type<tc>, window_params = [{transform_indices = @transform_0, window_bounds = array<i64: 1, 40, 256>}, {transform_indices = @transform_1, window_bounds = array<i64: 1, 40, 256>}, {transform_indices = @transform_2, window_bounds = array<i64: 1, 16, 256>}, {transform_indices = @transform_3, window_bounds = array<i64: 1, 16, 256>}, {pipeline_mode = #tpu.pipeline_mode<synchronous>, transform_indices = @transform_4, window_bounds = array<i64: 16, 40>}, {pipeline_mode = #tpu.pipeline_mode<synchronous>, transform_indices = @transform_5, window_bounds = array<i64: 16, 1>}, {transform_indices = @transform_6, window_bounds = array<i64: 1, 32, 256>}, {transform_indices = @transform_7, window_bounds = array<i64: 1, 32, 256>}]} {
    %c256_i32 = arith.constant 256 : i32
    %0 = arith.muli %arg1, %c256_i32 : i32
    %1 = tpu.assume_multiple %0, 256 : i32
    %c0 = arith.constant 0 : index
    %c0_0 = arith.constant 0 : index
    %2 = vector.load %arg6[%c0, %c0_0] : memref<16x40xf32, #tpu.memory_space<vmem>>, vector<16x40xf32>
    %c0_1 = arith.constant 0 : index
    %c0_2 = arith.constant 0 : index
    %3 = vector.load %arg7[%c0_1, %c0_2] : memref<16x1xf32, #tpu.memory_space<vmem>>, vector<16x1xf32>
    %c0_3 = arith.constant 0 : index
    %c0_4 = arith.constant 0 : index
    %4 = arith.index_cast %1 : i32 to index
    %5 = vector.load %arg2[%c0_3, %c0_4, %4] : memref<1x40x256xf32, #tpu.memory_space<vmem>>, vector<1x40x256xf32>
    %6 = vector.shape_cast %5 : vector<1x40x256xf32> to vector<40x256xf32>
    %c0_5 = arith.constant 0 : index
    %c0_6 = arith.constant 0 : index
    %7 = arith.index_cast %1 : i32 to index
    %8 = vector.load %arg3[%c0_5, %c0_6, %7] : memref<1x40x256xf32, #tpu.memory_space<vmem>>, vector<1x40x256xf32>
    %9 = vector.shape_cast %8 : vector<1x40x256xf32> to vector<40x256xf32>
    %10 = tpu.concatenate %6, %9 in 1 : vector<40x256xf32>, vector<40x256xf32> -> vector<40x512xf32>
    %cst = arith.constant dense<0.000000e+00> : vector<16x512xf32>
    %11 = tpu.matmul %2, %10, %cst {dimension_numbers = #tpu.dot_dimension_numbers<[1], [0], [0], [1], [0, 0, 1, 1], [], []>} : vector<16x40xf32>, vector<40x512xf32>, vector<16x512xf32> -> vector<16x512xf32>
    %12 = vector.broadcast %3 : vector<16x1xf32> to vector<16x512xf32>
    %13 = arith.addf %11, %12 : vector<16x512xf32>
    %14 = vector.extract_strided_slice %13 {offsets = [0, 0], sizes = [16, 256], strides = [1, 1]} : vector<16x512xf32> to vector<16x256xf32>
    %15 = vector.extract_strided_slice %13 {offsets = [0, 256], sizes = [16, 256], strides = [1, 1]} : vector<16x512xf32> to vector<16x256xf32>
    %c0_7 = arith.constant 0 : index
    %c0_8 = arith.constant 0 : index
    %c0_9 = arith.constant 0 : index
    %16 = vector.load %arg4[%c0_7, %c0_8, %c0_9] : memref<1x16x256xf32, #tpu.memory_space<vmem>>, vector<1x16x256xf32>
    %17 = vector.shape_cast %16 : vector<1x16x256xf32> to vector<16x256xf32>
    %c0_10 = arith.constant 0 : index
    %c0_11 = arith.constant 0 : index
    %c0_12 = arith.constant 0 : index
    %18 = vector.load %arg3[%c0_10, %c0_11, %c0_12] : memref<1x40x256xf32, #tpu.memory_space<vmem>>, vector<1x40x256xf32>
    %19 = vector.shape_cast %18 : vector<1x40x256xf32> to vector<40x256xf32>
    %cst_13 = arith.constant dense<0.000000e+00> : vector<256x256xf32>
    %20 = tpu.matmul %14, %17, %cst_13 {dimension_numbers = #tpu.dot_dimension_numbers<[0], [0], [1], [1], [0, 1, 1, 1], [], []>} : vector<16x256xf32>, vector<16x256xf32>, vector<256x256xf32> -> vector<256x256xf32>
    %cst_14 = arith.constant dense<0xFF800000> : vector<256xf32>
    %21 = vector.multi_reduction <maximumf>, %20, %cst_14 [1] : vector<256x256xf32> to vector<256xf32>
    %22 = vector.shape_cast %21 : vector<256xf32> to vector<256x1xf32>
    %23 = vector.broadcast %22 : vector<256x1xf32> to vector<256x256xf32>
    %24 = arith.subf %20, %23 : vector<256x256xf32>
    %25 = math.exp %24 : vector<256x256xf32>
    %cst_15 = arith.constant dense<0.000000e+00> : vector<40x256xf32>
    %26 = tpu.matmul %19, %25, %cst_15 {dimension_numbers = #tpu.dot_dimension_numbers<[1], [1], [0], [0], [0, 0, 1, 0], [], []>} : vector<40x256xf32>, vector<256x256xf32>, vector<40x256xf32> -> vector<40x256xf32>
    %27 = vector.extract_strided_slice %26 {offsets = [32, 0], sizes = [1, 256], strides = [1, 1]} : vector<40x256xf32> to vector<1x256xf32>
    %28 = vector.extract_strided_slice %26 {offsets = [0, 0], sizes = [32, 256], strides = [1, 1]} : vector<40x256xf32> to vector<32x256xf32>
    %29 = tpu.reciprocal %27 : vector<1x256xf32> -> vector<1x256xf32>
    %30 = vector.broadcast %29 : vector<1x256xf32> to vector<32x256xf32>
    %31 = arith.mulf %28, %30 : vector<32x256xf32>
    %c0_16 = arith.constant 0 : index
    %c0_17 = arith.constant 0 : index
    %c0_18 = arith.constant 0 : index
    %32 = vector.load %arg8[%c0_16, %c0_17, %c0_18] : memref<1x32x256xf32, #tpu.memory_space<vmem>>, vector<1x32x256xf32>
    %33 = vector.shape_cast %32 : vector<1x32x256xf32> to vector<32x256xf32>
    %34 = vector.shape_cast %31 : vector<32x256xf32> to vector<1x32x256xf32>
    tpu.vector_store %arg8[%c0_16, %c0_17, %c0_18], %34 {strides = array<i32>} : memref<1x32x256xf32, #tpu.memory_space<vmem>>, vector<1x32x256xf32>,
    %c0_19 = arith.constant 0 : index
    %c0_20 = arith.constant 0 : index
    %c0_21 = arith.constant 0 : index
    %35 = vector.load %arg5[%c0_19, %c0_20, %c0_21] : memref<1x16x256xf32, #tpu.memory_space<vmem>>, vector<1x16x256xf32>
    %36 = vector.shape_cast %35 : vector<1x16x256xf32> to vector<16x256xf32>
    %c0_22 = arith.constant 0 : index
    %c0_23 = arith.constant 0 : index
    %c0_24 = arith.constant 0 : index
    %37 = vector.load %arg2[%c0_22, %c0_23, %c0_24] : memref<1x40x256xf32, #tpu.memory_space<vmem>>, vector<1x40x256xf32>
    %38 = vector.shape_cast %37 : vector<1x40x256xf32> to vector<40x256xf32>
    %cst_25 = arith.constant dense<0.000000e+00> : vector<256x256xf32>
    %39 = tpu.matmul %15, %36, %cst_25 {dimension_numbers = #tpu.dot_dimension_numbers<[0], [0], [1], [1], [0, 1, 1, 1], [], []>} : vector<16x256xf32>, vector<16x256xf32>, vector<256x256xf32> -> vector<256x256xf32>
    %cst_26 = arith.constant dense<0xFF800000> : vector<256xf32>
    %40 = vector.multi_reduction <maximumf>, %39, %cst_26 [1] : vector<256x256xf32> to vector<256xf32>
    %41 = vector.shape_cast %40 : vector<256xf32> to vector<256x1xf32>
    %42 = vector.broadcast %41 : vector<256x1xf32> to vector<256x256xf32>
    %43 = arith.subf %39, %42 : vector<256x256xf32>
    %44 = math.exp %43 : vector<256x256xf32>
    %cst_27 = arith.constant dense<0.000000e+00> : vector<40x256xf32>
    %45 = tpu.matmul %38, %44, %cst_27 {dimension_numbers = #tpu.dot_dimension_numbers<[1], [1], [0], [0], [0, 0, 1, 0], [], []>} : vector<40x256xf32>, vector<256x256xf32>, vector<40x256xf32> -> vector<40x256xf32>
    %46 = vector.extract_strided_slice %45 {offsets = [32, 0], sizes = [1, 256], strides = [1, 1]} : vector<40x256xf32> to vector<1x256xf32>
    %47 = vector.extract_strided_slice %45 {offsets = [0, 0], sizes = [32, 256], strides = [1, 1]} : vector<40x256xf32> to vector<32x256xf32>
    %48 = tpu.reciprocal %46 : vector<1x256xf32> -> vector<1x256xf32>
    %49 = vector.broadcast %48 : vector<1x256xf32> to vector<32x256xf32>
    %50 = arith.mulf %47, %49 : vector<32x256xf32>
    %c0_28 = arith.constant 0 : index
    %c0_29 = arith.constant 0 : index
    %c0_30 = arith.constant 0 : index
    %51 = vector.load %arg9[%c0_28, %c0_29, %c0_30] : memref<1x32x256xf32, #tpu.memory_space<vmem>>, vector<1x32x256xf32>
    %52 = vector.shape_cast %51 : vector<1x32x256xf32> to vector<32x256xf32>
    %53 = vector.shape_cast %50 : vector<32x256xf32> to vector<1x32x256xf32>
    tpu.vector_store %arg9[%c0_28, %c0_29, %c0_30], %53 {strides = array<i32>} : memref<1x32x256xf32, #tpu.memory_space<vmem>>, vector<1x32x256xf32>,
    return
  }
  func.func @transform_0(%arg0: i32, %arg1: i32) -> (i32, i32, i32) {
    %c0_i32 = arith.constant 0 : i32
    %c0_i32_0 = arith.constant 0 : i32
    %c0_i32_1 = arith.constant 0 : i32
    return %arg0, %c0_i32, %c0_i32_0 : i32, i32, i32
  }
  func.func @transform_1(%arg0: i32, %arg1: i32) -> (i32, i32, i32) {
    %c0_i32 = arith.constant 0 : i32
    %c0_i32_0 = arith.constant 0 : i32
    %c0_i32_1 = arith.constant 0 : i32
    return %arg0, %c0_i32, %c0_i32_0 : i32, i32, i32
  }
  func.func @transform_2(%arg0: i32, %arg1: i32) -> (i32, i32, i32) {
    %c0_i32 = arith.constant 0 : i32
    %c0_i32_0 = arith.constant 0 : i32
    %c0_i32_1 = arith.constant 0 : i32
    return %arg0, %c0_i32, %c0_i32_0 : i32, i32, i32
  }
  func.func @transform_3(%arg0: i32, %arg1: i32) -> (i32, i32, i32) {
    %c0_i32 = arith.constant 0 : i32
    %c0_i32_0 = arith.constant 0 : i32
    %c0_i32_1 = arith.constant 0 : i32
    return %arg0, %c0_i32, %c0_i32_0 : i32, i32, i32
  }
  func.func @transform_4(%arg0: i32, %arg1: i32) -> (i32, i32) {
    %c0_i32 = arith.constant 0 : i32
    %c0_i32_0 = arith.constant 0 : i32
    %c0_i32_1 = arith.constant 0 : i32
    return %c0_i32, %c0_i32_0 : i32, i32
  }
  func.func @transform_5(%arg0: i32, %arg1: i32) -> (i32, i32) {
    %c0_i32 = arith.constant 0 : i32
    %c0_i32_0 = arith.constant 0 : i32
    %c0_i32_1 = arith.constant 0 : i32
    return %c0_i32, %c0_i32_0 : i32, i32
  }
  func.func @transform_6(%arg0: i32, %arg1: i32) -> (i32, i32, i32) {
    %c0_i32 = arith.constant 0 : i32
    %c0_i32_0 = arith.constant 0 : i32
    return %arg0, %c0_i32, %arg1 : i32, i32, i32
  }
  func.func @transform_7(%arg0: i32, %arg1: i32) -> (i32, i32, i32) {
    %c0_i32 = arith.constant 0 : i32
    %c0_i32_0 = arith.constant 0 : i32
    return %arg0, %c0_i32, %arg1 : i32, i32, i32
  }
}

</mosaic_0001>

<llo_original>
// kernel: tpu_custom_call.1
$region0: #{tpu_custom_call.1}
  #allocation0 [shape = 'u32[]', space=smem, size = 0x4, offset = 0x4, fixed_abs, tag = 'smem constant byte address 0x4 - core index']
  #allocation1 [shape = 'u32[72,128]{1,0:T(1,128)}', space=vmem, size = 0x9000, scoped, tag = 'internal scratch']
  %s0 = inlined_call_operand.hbm [shape: f32[2,40,256], index: 0, kind: input, shape index: {}]
  %s1 = inlined_call_operand.hbm [shape: f32[2,40,256], index: 1, kind: input, shape index: {}]
  %s2 = inlined_call_operand.hbm [shape: f32[2,16,256], index: 2, kind: input, shape index: {}]
  %s3 = inlined_call_operand.hbm [shape: f32[2,16,256], index: 3, kind: input, shape index: {}]
  %s4 = inlined_call_operand.vmem [shape: f32[16,40], index: 4, kind: input, shape index: {}]
  %s5 = inlined_call_operand.vmem [shape: f32[16,1], index: 5, kind: input, shape index: {}]
  %s6 = inlined_call_operand.hbm [shape: f32[2,32,256], index: 6, kind: output, shape index: {0}]
  %s7 = inlined_call_operand.hbm [shape: f32[2,32,256], index: 7, kind: output, shape index: {1}]
  %8 = xla_tuple %s6, %s7
  %s9 = sld [smem:[#allocation0]]
  $region81: #{tpu_custom_call.1} parent=0
    _
  %s11 = ssub.s32 1, %s9
  %s12 = scalar_select 0, %s11, %s9
  $region1: #{tpu_custom_call.1} parent=0
    #allocation2 [shape = 'u8[81920]{0}', space=vmem, size = 0x14000, scoped, tag = 'input window, operand 0']
    #allocation3 [shape = 's32[2]{0}', space=sflag, size = 0x8, scoped, tag = 'scoped memory for tpu_custom_call.1']
    #allocation4 [shape = 's32[2]{0}', space=sflag, size = 0x8, scoped, tag = 'scoped memory for tpu_custom_call.1']
    #allocation5 [shape = 'u8[81920]{0}', space=vmem, size = 0x14000, scoped, tag = 'input window, operand 1']
    #allocation6 [shape = 's32[2]{0}', space=sflag, size = 0x8, scoped, tag = 'scoped memory for tpu_custom_call.1']
    #allocation7 [shape = 'u8[32768]{0}', space=vmem, size = 0x8000, scoped, tag = 'input window, operand 2']
    #allocation8 [shape = 'u8[32768]{0}', space=vmem, size = 0x8000, scoped, tag = 'input window, operand 3']
    #allocation9 [shape = 's32[2]{0}', space=sflag, size = 0x8, scoped, tag = 'scoped memory for tpu_custom_call.1']
    #allocation10 [shape = 'u8[65536]{0}', space=vmem, size = 0x10000, scoped, tag = 'output window, operand 0']
    #allocation11 [shape = 'u8[65536]{0}', space=vmem, size = 0x10000, scoped, tag = 'output window, operand 1']
    #allocation12 [shape = 's32[2]{0}', space=sflag, size = 0x8, scoped, tag = 'scoped memory for tpu_custom_call.1']
    %13 = vsyncpa [#allocation3], 0
    %s14 = scalar_lea.sflag [#allocation3], 1
    %15 = vsyncpa %s14, 0
    %16 = vsyncpa [#allocation6], 0
    %s17 = scalar_lea.sflag [#allocation6], 1
    %18 = vsyncpa %s17, 0
    %19 = vsyncpa [#allocation9], 0
    %s20 = scalar_lea.sflag [#allocation9], 1
    %21 = vsyncpa %s20, 0
    %22 = vsyncpa [#allocation4], 0
    %s23 = scalar_lea.sflag [#allocation4], 1
    %24 = vsyncpa %s23, 0
    %25 = vsyncpa [#allocation12], 0
    %s26 = scalar_lea.sflag [#allocation12], 1
    %27 = vsyncpa %s26, 0
    loop: start=0, step=1, limit=4
    $region2: #{tpu_custom_call.1} parent=1 // loop_pre_header
      _
    $region3: #{tpu_custom_call.1} parent=1 // loop_header
      %s29 = sphi 0, %s33
      %p30 = scmp.ge.s32.totalorder %s29, 4
      %s36 = sphi 0, %s48
      %s37 = sphi 0, %s44
      %s38 = sphi 0, %s36
      %s39 = sphi 0, %s37
      %s40 = sphi 0, %s38
      %s41 = sphi 0, %s39
      %s51 = sphi 0, %s53
      %s54 = sphi 0, %s51
      %s55 = sphi 0, %s54
      %s71 = sphi 0, %s55
      %s77 = sphi 0, %s79
      %s80 = sphi 0, %s77
      %s81 = sphi 0, %s80
      %s97 = sphi 0, %s81
      %s103 = sphi 0, %s105
      %s106 = sphi 0, %s103
      %s107 = sphi 0, %s106
      %s123 = sphi 0, %s107
      %s129 = sphi 0, %s131
      %s132 = sphi 0, %s129
      %s133 = sphi 0, %s132
      %s149 = sphi 0, %s133
      %s153 = sphi 0, %s153
      %s155 = sphi 0, %s153
      %s156 = sphi 0, %s155
      %s170 = sphi 0, %s156
      %s174 = sphi 0, %s174
      %s176 = sphi 0, %s174
      %s177 = sphi 0, %s176
      %s191 = sphi 0, %s177
      %s199 = sphi 0, %s201
      %s202 = sphi 0, %s199
      %s203 = sphi 0, %s202
      %s219 = sphi 0, %s203
      %s227 = sphi 0, %s229
      %s230 = sphi 0, %s227
      %s231 = sphi 0, %s230
      %s247 = sphi 0, %s231
    $region4: #{tpu_custom_call.1} parent=1 // loop_header_branch
      %32 = sbr.rel (%p30) target = $region8
    $region5: #{tpu_custom_call.1} parent=1 // loop_body
      %s34 = ssub.s32 %s29, 1
      %s35 = ssub.s32 %s29, 2
      %s42 = sadd.s32 1, %s37
      %p43 = scmp.ge.s32.totalorder %s42, 1
      %s44 = scalar_select %p43, 0, %s42
      %s45 = sadd.s32 1, %s36
      %s46 = scalar_select %p43, %s45, %s36
      %p47 = scmp.ge.s32.totalorder %s46, 2
      %s48 = scalar_select %p47, 0, %s46
      %s49 = ssub.s32 %s36, %s48
      %p50 = scmp.eq.s32.totalorder %s49, 0
      %s52 = sadd.s32 %s51, 1
      %s53 = scalar_select %p50, %s51, %s52
      %p56 = pneg %p50
      %p57 = scmp.eq.s32.totalorder %s29, 1
      %p58 = por %p56, %p57
      %p59 = scmp.ne.s32.totalorder %s51, %s54
      %p60 = scmp.eq.s32.totalorder %s29, 0
      %p61 = por %p59, %p60
      %p62 = scmp.ne.s32.totalorder %s51, %s54
      %p63 = scmp.eq.s32.totalorder %s34, 1
      %p64 = por %p62, %p63
      %p65 = scmp.ne.s32.totalorder %s54, %s55
      %p66 = scmp.eq.s32.totalorder %s34, 0
      %p67 = por %p65, %p66
      %p68 = scmp.ne.s32.totalorder %s54, %s55
      %p69 = scmp.eq.s32.totalorder %s35, 1
      %p70 = por %p68, %p69
      %p72 = scmp.ne.s32.totalorder %s55, %s71
      %p73 = scmp.eq.s32.totalorder %s35, 0
      %p74 = por %p72, %p73
      %s75 = ssub.s32 %s36, %s48
      %p76 = scmp.eq.s32.totalorder %s75, 0
      %s78 = sadd.s32 %s77, 1
      %s79 = scalar_select %p76, %s77, %s78
      %p82 = pneg %p76
      %p83 = scmp.eq.s32.totalorder %s29, 1
      %p84 = por %p82, %p83
      %p85 = scmp.ne.s32.totalorder %s77, %s80
      %p86 = scmp.eq.s32.totalorder %s29, 0
      %p87 = por %p85, %p86
      %p88 = scmp.ne.s32.totalorder %s77, %s80
      %p89 = scmp.eq.s32.totalorder %s34, 1
      %p90 = por %p88, %p89
      %p91 = scmp.ne.s32.totalorder %s80, %s81
      %p92 = scmp.eq.s32.totalorder %s34, 0
      %p93 = por %p91, %p92
      %p94 = scmp.ne.s32.totalorder %s80, %s81
      %p95 = scmp.eq.s32.totalorder %s35, 1
      %p96 = por %p94, %p95
      %p98 = scmp.ne.s32.totalorder %s81, %s97
      %p99 = scmp.eq.s32.totalorder %s35, 0
      %p100 = por %p98, %p99
      %s101 = ssub.s32 %s36, %s48
      %p102 = scmp.eq.s32.totalorder %s101, 0
      %s104 = sadd.s32 %s103, 1
      %s105 = scalar_select %p102, %s103, %s104
      %p108 = pneg %p102
      %p109 = scmp.eq.s32.totalorder %s29, 1
      %p110 = por %p108, %p109
      %p111 = scmp.ne.s32.totalorder %s103, %s106
      %p112 = scmp.eq.s32.totalorder %s29, 0
      %p113 = por %p111, %p112
      %p114 = scmp.ne.s32.totalorder %s103, %s106
      %p115 = scmp.eq.s32.totalorder %s34, 1
      %p116 = por %p114, %p115
      %p117 = scmp.ne.s32.totalorder %s106, %s107
      %p118 = scmp.eq.s32.totalorder %s34, 0
      %p119 = por %p117, %p118
      %p120 = scmp.ne.s32.totalorder %s106, %s107
      %p121 = scmp.eq.s32.totalorder %s35, 1
      %p122 = por %p120, %p121
      %p124 = scmp.ne.s32.totalorder %s107, %s123
      %p125 = scmp.eq.s32.totalorder %s35, 0
      %p126 = por %p124, %p125
      %s127 = ssub.s32 %s36, %s48
      %p128 = scmp.eq.s32.totalorder %s127, 0
      %s130 = sadd.s32 %s129, 1
      %s131 = scalar_select %p128, %s129, %s130
      %p134 = pneg %p128
      %p135 = scmp.eq.s32.totalorder %s29, 1
      %p136 = por %p134, %p135
      %p137 = scmp.ne.s32.totalorder %s129, %s132
      %p138 = scmp.eq.s32.totalorder %s29, 0
      %p139 = por %p137, %p138
      %p140 = scmp.ne.s32.totalorder %s129, %s132
      %p141 = scmp.eq.s32.totalorder %s34, 1
      %p142 = por %p140, %p141
      %p143 = scmp.ne.s32.totalorder %s132, %s133
      %p144 = scmp.eq.s32.totalorder %s34, 0
      %p145 = por %p143, %p144
      %p146 = scmp.ne.s32.totalorder %s132, %s133
      %p147 = scmp.eq.s32.totalorder %s35, 1
      %p148 = por %p146, %p147
      %p150 = scmp.ne.s32.totalorder %s133, %s149
      %p151 = scmp.eq.s32.totalorder %s35, 0
      %p152 = por %p150, %p151
      %s154 = sadd.s32 %s153, 1
      %p157 = scmp.eq.s32.totalorder %s29, 1
      %p158 = scmp.ne.s32.totalorder %s153, %s155
      %p159 = scmp.eq.s32.totalorder %s29, 0
      %p160 = por %p158, %p159
      %p161 = scmp.ne.s32.totalorder %s153, %s155
      %p162 = scmp.eq.s32.totalorder %s34, 1
      %p163 = por %p161, %p162
      %p164 = scmp.ne.s32.totalorder %s155, %s156
      %p165 = scmp.eq.s32.totalorder %s34, 0
      %p166 = por %p164, %p165
      %p167 = scmp.ne.s32.totalorder %s155, %s156
      %p168 = scmp.eq.s32.totalorder %s35, 1
      %p169 = por %p167, %p168
      %p171 = scmp.ne.s32.totalorder %s156, %s170
      %p172 = scmp.eq.s32.totalorder %s35, 0
      %p173 = por %p171, %p172
      %s175 = sadd.s32 %s174, 1
      %p178 = scmp.eq.s32.totalorder %s29, 1
      %p179 = scmp.ne.s32.totalorder %s174, %s176
      %p180 = scmp.eq.s32.totalorder %s29, 0
      %p181 = por %p179, %p180
      %p182 = scmp.ne.s32.totalorder %s174, %s176
      %p183 = scmp.eq.s32.totalorder %s34, 1
      %p184 = por %p182, %p183
      %p185 = scmp.ne.s32.totalorder %s176, %s177
      %p186 = scmp.eq.s32.totalorder %s34, 0
      %p187 = por %p185, %p186
      %p188 = scmp.ne.s32.totalorder %s176, %s177
      %p189 = scmp.eq.s32.totalorder %s35, 1
      %p190 = por %p188, %p189
      %p192 = scmp.ne.s32.totalorder %s177, %s191
      %p193 = scmp.eq.s32.totalorder %s35, 0
      %p194 = por %p192, %p193
      %s195 = ssub.s32 %s36, %s48
      %s196 = ssub.s32 %s37, %s44
      %s197 = sor.u32 %s195, %s196
      %p198 = scmp.eq.s32.totalorder %s197, 0
      %s200 = sadd.s32 %s199, 1
      %s201 = scalar_select %p198, %s199, %s200
      %p204 = pneg %p198
      %p205 = scmp.eq.s32.totalorder %s29, 1
      %p206 = por %p204, %p205
      %p207 = scmp.ne.s32.totalorder %s199, %s202
      %p208 = scmp.eq.s32.totalorder %s29, 0
      %p209 = por %p207, %p208
      %p210 = scmp.ne.s32.totalorder %s199, %s202
      %p211 = scmp.eq.s32.totalorder %s34, 1
      %p212 = por %p210, %p211
      %p213 = scmp.ne.s32.totalorder %s202, %s203
      %p214 = scmp.eq.s32.totalorder %s34, 0
      %p215 = por %p213, %p214
      %p216 = scmp.ne.s32.totalorder %s202, %s203
      %p217 = scmp.eq.s32.totalorder %s35, 1
      %p218 = por %p216, %p217
      %p220 = scmp.ne.s32.totalorder %s203, %s219
      %p221 = scmp.eq.s32.totalorder %s35, 0
      %p222 = por %p220, %p221
      %s223 = ssub.s32 %s36, %s48
      %s224 = ssub.s32 %s37, %s44
      %s225 = sor.u32 %s223, %s224
      %p226 = scmp.eq.s32.totalorder %s225, 0
      %s228 = sadd.s32 %s227, 1
      %s229 = scalar_select %p226, %s227, %s228
      %p232 = pneg %p226
      %p233 = scmp.eq.s32.totalorder %s29, 1
      %p234 = por %p232, %p233
      %p235 = scmp.ne.s32.totalorder %s227, %s230
      %p236 = scmp.eq.s32.totalorder %s29, 0
      %p237 = por %p235, %p236
      %p238 = scmp.ne.s32.totalorder %s227, %s230
      %p239 = scmp.eq.s32.totalorder %s34, 1
      %p240 = por %p238, %p239
      %p241 = scmp.ne.s32.totalorder %s230, %s231
      %p242 = scmp.eq.s32.totalorder %s34, 0
      %p243 = por %p241, %p242
      %p244 = scmp.ne.s32.totalorder %s230, %s231
      %p245 = scmp.eq.s32.totalorder %s35, 1
      %p246 = por %p244, %p245
      %p248 = scmp.ne.s32.totalorder %s231, %s247
      %p249 = scmp.eq.s32.totalorder %s35, 0
      %p250 = por %p248, %p249
      %p251 = scmp.le.s32.totalorder 1, %s29
      %p252 = scmp.lt.s32.totalorder %s29, 3
      %p253 = pnand %p251, %p252
      %p254 = pneg %p253
      // Predicated region
      $region9: #{tpu_custom_call.1} parent=5 // pred_check
        _
      $region10: #{tpu_custom_call.1} parent=5 // pred_check_branch
        %256 = sbr.rel (%p253) target = $region12
      $region11: #{tpu_custom_call.1} parent=5 // pred_region
        %s257 = ssub.s32 %s29, 1
        // Predicated region
        $region13: #{tpu_custom_call.1} parent=11 // pred_check
          %p258 = pneg %p166
        $region14: #{tpu_custom_call.1} parent=11 // pred_check_branch
          %260 = sbr.rel (%p258) target = $region16
        $region15: #{tpu_custom_call.1} parent=11 // pred_region
          _
        $region16: #{tpu_custom_call.1} parent=11 // pred_fallthru
          _
        // Predicated region
        $region17: #{tpu_custom_call.1} parent=11 // pred_check
          %p261 = pneg %p187
        $region18: #{tpu_custom_call.1} parent=11 // pred_check_branch
          %263 = sbr.rel (%p261) target = $region20
        $region19: #{tpu_custom_call.1} parent=11 // pred_region
          _
        $region20: #{tpu_custom_call.1} parent=11 // pred_fallthru
          _
      $region12: #{tpu_custom_call.1} parent=5 // pred_fallthru
        _
      %p264 = scmp.lt.s32.totalorder %s29, 2
      // Predicated region
      $region21: #{tpu_custom_call.1} parent=5 // pred_check
        %p265 = pneg %p264
      $region22: #{tpu_custom_call.1} parent=5 // pred_check_branch
        %267 = sbr.rel (%p265) target = $region24
      $region23: #{tpu_custom_call.1} parent=5 // pred_region
        // Predicated region
        $region25: #{tpu_custom_call.1} parent=23 // pred_check
          %p268 = pneg %p61
        $region26: #{tpu_custom_call.1} parent=23 // pred_check_branch
          %270 = sbr.rel (%p268) target = $region28
        $region27: #{tpu_custom_call.1} parent=23 // pred_region
          %s271 = sand.u32 %s51, 1
          %s272 = scalar_lea.sflag [#allocation3], %s271
          %s273 = sand.u32 %s51, 1
          %s274 = smul.addr %s273, 80
          %s275 = scalar_lea.vmem [#allocation2], %s274
          %277 = vsyncadd %s272, 0
          %s278 = smul.addr %s36, 10
          %s279 = smul.addr %s278, 8
          %s280 = scalar_lea.hbm %s0, %s279
          %s281 = sshll.u32 %s280, 4
          %s282 = int_to_ptr.hbm [resolvable:$true] %s281
          %s283 = sshll.u32 %s275, 4
          %s284 = int_to_ptr.vmem [resolvable:$true] %s283
          %289 = dma.hbm_to_vmem [thread:$0]  %s282, 1280, %s284, %s272, 256, 256, 16
        $region28: #{tpu_custom_call.1} parent=23 // pred_fallthru
          _
        // Predicated region
        $region29: #{tpu_custom_call.1} parent=23 // pred_check
          %p290 = pneg %p87
        $region30: #{tpu_custom_call.1} parent=23 // pred_check_branch
          %292 = sbr.rel (%p290) target = $region32
        $region31: #{tpu_custom_call.1} parent=23 // pred_region
          %s293 = sand.u32 %s29, 1
          %s294 = scalar_lea.sflag [#allocation6], %s293
          %s295 = sand.u32 %s77, 1
          %s296 = smul.addr %s295, 80
          %s297 = scalar_lea.vmem [#allocation5], %s296
          %299 = vsyncadd %s294, 0
          %s300 = smul.addr %s36, 10
          %s301 = smul.addr %s300, 8
          %s302 = scalar_lea.hbm %s1, %s301
          %s303 = sshll.u32 %s302, 4
          %s304 = int_to_ptr.hbm [resolvable:$true] %s303
          %s305 = sshll.u32 %s297, 4
          %s306 = int_to_ptr.vmem [resolvable:$true] %s305
          %311 = dma.hbm_to_vmem [thread:$0]  %s304, 1280, %s306, %s294, 256, 256, 16
        $region32: #{tpu_custom_call.1} parent=23 // pred_fallthru
          _
        // Predicated region
        $region33: #{tpu_custom_call.1} parent=23 // pred_check
          %p312 = pneg %p113
        $region34: #{tpu_custom_call.1} parent=23 // pred_check_branch
          %314 = sbr.rel (%p312) target = $region36
        $region35: #{tpu_custom_call.1} parent=23 // pred_region
          %s315 = sand.u32 %s29, 1
          %s316 = scalar_lea.sflag [#allocation6], %s315
          %s317 = sand.u32 %s103, 1
          %s318 = smul.addr %s317, 32
          %s319 = scalar_lea.vmem [#allocation7], %s318
          %321 = vsyncadd %s316, 0
          %s322 = smul.addr %s36, 4
          %s323 = smul.addr %s322, 8
          %s324 = scalar_lea.hbm %s2, %s323
          %s325 = sshll.u32 %s324, 4
          %s326 = int_to_ptr.hbm [resolvable:$true] %s325
          %s327 = sshll.u32 %s319, 4
          %s328 = int_to_ptr.vmem [resolvable:$true] %s327
          %333 = dma.hbm_to_vmem [thread:$0]  %s326, 512, %s328, %s316, 256, 256, 16
        $region36: #{tpu_custom_call.1} parent=23 // pred_fallthru
          _
        // Predicated region
        $region37: #{tpu_custom_call.1} parent=23 // pred_check
          %p334 = pneg %p139
        $region38: #{tpu_custom_call.1} parent=23 // pred_check_branch
          %336 = sbr.rel (%p334) target = $region40
        $region39: #{tpu_custom_call.1} parent=23 // pred_region
          %s337 = sand.u32 %s129, 1
          %s338 = scalar_lea.sflag [#allocation9], %s337
          %s339 = sand.u32 %s129, 1
          %s340 = smul.addr %s339, 32
          %s341 = scalar_lea.vmem [#allocation8], %s340
          %343 = vsyncadd %s338, 0
          %s344 = smul.addr %s36, 4
          %s345 = smul.addr %s344, 8
          %s346 = scalar_lea.hbm %s3, %s345
          %s347 = sshll.u32 %s346, 4
          %s348 = int_to_ptr.hbm [resolvable:$true] %s347
          %s349 = sshll.u32 %s341, 4
          %s350 = int_to_ptr.vmem [resolvable:$true] %s349
          %355 = dma.hbm_to_vmem [thread:$0]  %s348, 512, %s350, %s338, 256, 256, 16
        $region40: #{tpu_custom_call.1} parent=23 // pred_fallthru
          _
      $region24: #{tpu_custom_call.1} parent=5 // pred_fallthru
        _
      %p356 = scmp.le.s32.totalorder 1, %s29
      %p357 = scmp.lt.s32.totalorder %s29, 3
      %p358 = pnand %p356, %p357
      %p359 = pneg %p358
      // Predicated region
      $region41: #{tpu_custom_call.1} parent=5 // pred_check
        _
      $region42: #{tpu_custom_call.1} parent=5 // pred_check_branch
        %361 = sbr.rel (%p358) target = $region44
      $region43: #{tpu_custom_call.1} parent=5 // pred_region
        %s362 = ssub.s32 %s29, 1
        %s363 = sand.u32 %s54, 1
        %s364 = scalar_lea.sflag [#allocation3], %s363
        %s365 = sand.u32 %s54, 1
        %s366 = smul.addr %s365, 80
        %s367 = scalar_lea.vmem [#allocation2], %s366
        // Predicated region
        $region45: #{tpu_custom_call.1} parent=43 // pred_check
          %p368 = pneg %p67
        $region46: #{tpu_custom_call.1} parent=43 // pred_check_branch
          %370 = sbr.rel (%p368) target = $region48
        $region47: #{tpu_custom_call.1} parent=43 // pred_region
          %372 = dma.done %s364, 1280
        $region48: #{tpu_custom_call.1} parent=43 // pred_fallthru
          _
        %s373 = sand.u32 %s34, 1
        %s374 = scalar_lea.sflag [#allocation6], %s373
        %s375 = sand.u32 %s80, 1
        %s376 = smul.addr %s375, 80
        %s377 = scalar_lea.vmem [#allocation5], %s376
        // Predicated region
        $region49: #{tpu_custom_call.1} parent=43 // pred_check
          %p378 = pneg %p93
        $region50: #{tpu_custom_call.1} parent=43 // pred_check_branch
          %380 = sbr.rel (%p378) target = $region52
        $region51: #{tpu_custom_call.1} parent=43 // pred_region
          %382 = dma.done %s374, 1280
        $region52: #{tpu_custom_call.1} parent=43 // pred_fallthru
          _
        %s383 = sand.u32 %s34, 1
        %s384 = scalar_lea.sflag [#allocation6], %s383
        %s385 = sand.u32 %s106, 1
        %s386 = smul.addr %s385, 32
        %s387 = scalar_lea.vmem [#allocation7], %s386
        // Predicated region
        $region53: #{tpu_custom_call.1} parent=43 // pred_check
          %p388 = pneg %p119
        $region54: #{tpu_custom_call.1} parent=43 // pred_check_branch
          %390 = sbr.rel (%p388) target = $region56
        $region55: #{tpu_custom_call.1} parent=43 // pred_region
          %392 = dma.done %s384, 512
        $region56: #{tpu_custom_call.1} parent=43 // pred_fallthru
          _
        %s393 = sand.u32 %s132, 1
        %s394 = scalar_lea.sflag [#allocation9], %s393
        %s395 = sand.u32 %s132, 1
        %s396 = smul.addr %s395, 32
        %s397 = scalar_lea.vmem [#allocation8], %s396
        // Predicated region
        $region57: #{tpu_custom_call.1} parent=43 // pred_check
          %p398 = pneg %p145
        $region58: #{tpu_custom_call.1} parent=43 // pred_check_branch
          %400 = sbr.rel (%p398) target = $region60
        $region59: #{tpu_custom_call.1} parent=43 // pred_region
          %402 = dma.done %s394, 512
        $region60: #{tpu_custom_call.1} parent=43 // pred_fallthru
          _
        %s403 = sand.u32 %s54, 1
        %s404 = scalar_lea.sflag [#allocation3], %s403
        %s405 = sand.u32 %s54, 1
        %s406 = smul.addr %s405, 80
        %s407 = scalar_lea.vmem [#allocation2], %s406
        %p408 = pneg %p67
        %p409 = pneg %p64
        %s410 = sand.u32 %s34, 1
        %s411 = scalar_lea.sflag [#allocation6], %s410
        %s412 = sand.u32 %s80, 1
        %s413 = smul.addr %s412, 80
        %s414 = scalar_lea.vmem [#allocation5], %s413
        %p415 = pneg %p93
        %p416 = pneg %p90
        %s417 = sand.u32 %s34, 1
        %s418 = scalar_lea.sflag [#allocation6], %s417
        %s419 = sand.u32 %s106, 1
        %s420 = smul.addr %s419, 32
        %s421 = scalar_lea.vmem [#allocation7], %s420
        %p422 = pneg %p119
        %p423 = pneg %p116
        %s424 = sand.u32 %s132, 1
        %s425 = scalar_lea.sflag [#allocation9], %s424
        %s426 = sand.u32 %s132, 1
        %s427 = smul.addr %s426, 32
        %s428 = scalar_lea.vmem [#allocation8], %s427
        %p429 = pneg %p145
        %p430 = pneg %p142
        %p431 = pneg %p166
        %p432 = pneg %p163
        %p433 = pneg %p187
        %p434 = pneg %p184
        %p435 = pneg %p215
        %p436 = pneg %p212
        %s437 = sand.u32 %s202, 1
        %s438 = scalar_lea.sflag [#allocation4], %s437
        %s439 = sand.u32 %s202, 1
        %s440 = smul.addr %s439, 64
        %s441 = scalar_lea.vmem [#allocation10], %s440
        %p442 = pneg %p243
        %p443 = pneg %p240
        %s444 = sand.u32 %s230, 1
        %s445 = scalar_lea.sflag [#allocation12], %s444
        %s446 = sand.u32 %s230, 1
        %s447 = smul.addr %s446, 64
        %s448 = scalar_lea.vmem [#allocation11], %s447
        %s449 = smul.u32 2, %s39
        %s450 = smul.u32 2, %s39
        %s451 = smul.u32 %s39, 256
        %v452 = vld [vmem:[%s4] sm:$0xff]
        %v453 = vld [vmem:[%s4 + $0x8] sm:$0xff]
        %v454 = vld [vmem:[%s5] sm:$0xff]
        %v455 = vld [vmem:[%s5 + $0x8] sm:$0xff]
        %s456 = sshra.s32 %s451, 7
        %s457 = sand.u32 %s451, 127
        %s458 = smul.addr %s456, 8
        %s459 = scalar_lea.vmem %s367, %s458 [#allocation2]
        %v460 = vld [vmem:[%s459] sm:$0xff]
        %v461 = vld [vmem:[%s459 + $0x8] sm:$0xff]
        %v462 = vld [vmem:[%s459 + $0x10] sm:$0xff]
        %v463 = vld [vmem:[%s459 + $0x18] sm:$0xff]
        %v464 = vld [vmem:[%s459 + $0x20] sm:$0xff]
        %v465 = vld [vmem:[%s459 + $0x28] sm:$0xff]
        %v466 = vld [vmem:[%s459 + $0x30] sm:$0xff]
        %v467 = vld [vmem:[%s459 + $0x38] sm:$0xff]
        %v468 = vld [vmem:[%s459 + $0x40] sm:$0xff]
        %v469 = vld [vmem:[%s459 + $0x48] sm:$0xff]
        %s470 = smul.addr %s456, 8
        %s471 = scalar_lea.vmem %s377, %s470 [#allocation5]
        %v472 = vld [vmem:[%s471] sm:$0xff]
        %v473 = vld [vmem:[%s471 + $0x8] sm:$0xff]
        %v474 = vld [vmem:[%s471 + $0x10] sm:$0xff]
        %v475 = vld [vmem:[%s471 + $0x18] sm:$0xff]
        %v476 = vld [vmem:[%s471 + $0x20] sm:$0xff]
        %v477 = vld [vmem:[%s471 + $0x28] sm:$0xff]
        %v478 = vld [vmem:[%s471 + $0x30] sm:$0xff]
        %v479 = vld [vmem:[%s471 + $0x38] sm:$0xff]
        %v480 = vld [vmem:[%s471 + $0x40] sm:$0xff]
        %v481 = vld [vmem:[%s471 + $0x48] sm:$0xff]
        %483 = vset.pattern.permute.xlu0 0
        %484 = vperm.xlu0 %483, %v454
        %v485 = vpop.permute.xlu0 %484
        %488 = vset.pattern.permute.xlu0 0
        %489 = vperm.xlu0 %488, %v455
        %v490 = vpop.permute.xlu0 %489
        %vm492 = vcmask 326656
        %v494 = vsel %vm492, %v452, 0
        %v497 = vsel %vm492, %v453, 0
        %499 = vmatpush.msra.mxu0 0.0
        %500 = vmatpush.msra.mxu0 0.0
        %501 = vmatpush.msra.mxu0 0.0
        %502 = vmatpush.msra.mxu0 0.0
        %503 = vmatpush.msra.mxu0 0.0
        %504 = vmatpush.msra.mxu0 0.0
        %505 = vmatpush.msra.mxu0 0.0
        %506 = vmatpush.msra.mxu0 0.0
        %507 = vmatpush.msra.mxu0 0.0
        %508 = vmatpush.msra.mxu0 0.0
        %509 = vmatpush.msra.mxu0 0.0
        %510 = vmatpush.msra.mxu0 %v468
        %511 = vmatpush.msra.mxu0 %v466
        %512 = vmatpush.msra.mxu0 %v464
        %513 = vmatpush.msra.mxu0 %v462
        %514 = vmatpush.msra.mxu0 %v460
        %515 = vmatmul.f32.gmra.mxu0 %v494
        %v516 = vpop.f32.mrf.mxu0
        %v517 = vadd.f32 %v485, %v516
        %518 = vmatmul.f32.gmra.mxu0 %v497
        %v519 = vpop.f32.mrf.mxu0
        %v520 = vadd.f32 %v490, %v519
        %521 = vdwg.mxu0
        %522 = vmatpush.msra.mxu0 0.0
        %523 = vmatpush.msra.mxu0 0.0
        %524 = vmatpush.msra.mxu0 0.0
        %525 = vmatpush.msra.mxu0 0.0
        %526 = vmatpush.msra.mxu0 0.0
        %527 = vmatpush.msra.mxu0 0.0
        %528 = vmatpush.msra.mxu0 0.0
        %529 = vmatpush.msra.mxu0 0.0
        %530 = vmatpush.msra.mxu0 0.0
        %531 = vmatpush.msra.mxu0 0.0
        %532 = vmatpush.msra.mxu0 0.0
        %533 = vmatpush.msra.mxu0 %v469
        %534 = vmatpush.msra.mxu0 %v467
        %535 = vmatpush.msra.mxu0 %v465
        %536 = vmatpush.msra.mxu0 %v463
        %537 = vmatpush.msra.mxu0 %v461
        %538 = vmatmul.f32.gmra.mxu0 %v494
        %v539 = vpop.f32.mrf.mxu0
        %v540 = vadd.f32 %v485, %v539
        %541 = vmatmul.f32.gmra.mxu0 %v497
        %v542 = vpop.f32.mrf.mxu0
        %v543 = vadd.f32 %v490, %v542
        %544 = vdwg.mxu0
        %545 = vmatpush.msra.mxu0 0.0
        %546 = vmatpush.msra.mxu0 0.0
        %547 = vmatpush.msra.mxu0 0.0
        %548 = vmatpush.msra.mxu0 0.0
        %549 = vmatpush.msra.mxu0 0.0
        %550 = vmatpush.msra.mxu0 0.0
        %551 = vmatpush.msra.mxu0 0.0
        %552 = vmatpush.msra.mxu0 0.0
        %553 = vmatpush.msra.mxu0 0.0
        %554 = vmatpush.msra.mxu0 0.0
        %555 = vmatpush.msra.mxu0 0.0
        %556 = vmatpush.msra.mxu0 %v480
        %557 = vmatpush.msra.mxu0 %v478
        %558 = vmatpush.msra.mxu0 %v476
        %559 = vmatpush.msra.mxu0 %v474
        %560 = vmatpush.msra.mxu0 %v472
        %561 = vmatmul.f32.gmra.mxu0 %v494
        %v562 = vpop.f32.mrf.mxu0
        %v563 = vadd.f32 %v485, %v562
        %564 = vmatmul.f32.gmra.mxu0 %v497
        %v565 = vpop.f32.mrf.mxu0
        %v566 = vadd.f32 %v490, %v565
        %567 = vdwg.mxu0
        %568 = vmatpush.msra.mxu0 0.0
        %569 = vmatpush.msra.mxu0 0.0
        %570 = vmatpush.msra.mxu0 0.0
        %571 = vmatpush.msra.mxu0 0.0
        %572 = vmatpush.msra.mxu0 0.0
        %573 = vmatpush.msra.mxu0 0.0
        %574 = vmatpush.msra.mxu0 0.0
        %575 = vmatpush.msra.mxu0 0.0
        %576 = vmatpush.msra.mxu0 0.0
        %577 = vmatpush.msra.mxu0 0.0
        %578 = vmatpush.msra.mxu0 0.0
        %579 = vmatpush.msra.mxu0 %v481
        %580 = vmatpush.msra.mxu0 %v479
        %581 = vmatpush.msra.mxu0 %v477
        %582 = vmatpush.msra.mxu0 %v475
        %583 = vmatpush.msra.mxu0 %v473
        %584 = vmatmul.f32.gmra.mxu0 %v494
        %v585 = vpop.f32.mrf.mxu0
        %v586 = vadd.f32 %v485, %v585
        %587 = vmatmul.f32.gmra.mxu0 %v497
        %v588 = vpop.f32.mrf.mxu0
        %v589 = vadd.f32 %v490, %v588
        %590 = vdwg.mxu0
        %v591 = vld [vmem:[%s387] sm:$0xff]
        %v592 = vld [vmem:[%s387 + $0x8] sm:$0xff]
        %v593 = vld [vmem:[%s387 + $0x10] sm:$0xff]
        %v594 = vld [vmem:[%s387 + $0x18] sm:$0xff]
        %v595 = vld [vmem:[%s377] sm:$0xff]
        %v596 = vld [vmem:[%s377 + $0x8] sm:$0xff]
        %v597 = vld [vmem:[%s377 + $0x10] sm:$0xff]
        %v598 = vld [vmem:[%s377 + $0x18] sm:$0xff]
        %v599 = vld [vmem:[%s377 + $0x20] sm:$0xff]
        %v600 = vld [vmem:[%s377 + $0x28] sm:$0xff]
        %v601 = vld [vmem:[%s377 + $0x30] sm:$0xff]
        %v602 = vld [vmem:[%s377 + $0x38] sm:$0xff]
        %v603 = vld [vmem:[%s377 + $0x40] sm:$0xff]
        %v604 = vld [vmem:[%s377 + $0x48] sm:$0xff]
        %605 = vxpose.xlu0.b32.start [1/16] %v517, 128
        %606 = vxpose.xlu0.b32.cont [2/16] %v520, 128
        %607 = vxpose.xlu0.b32.cont [3/16] 0.0, 128
        %608 = vxpose.xlu0.b32.cont [4/16] 0.0, 128
        %609 = vxpose.xlu0.b32.cont [5/16] 0.0, 128
        %610 = vxpose.xlu0.b32.cont [6/16] 0.0, 128
        %611 = vxpose.xlu0.b32.cont [7/16] 0.0, 128
        %612 = vxpose.xlu0.b32.cont [8/16] 0.0, 128
        %613 = vxpose.xlu0.b32.cont [9/16] 0.0, 128
        %614 = vxpose.xlu0.b32.cont [10/16] 0.0, 128
        %615 = vxpose.xlu0.b32.cont [11/16] 0.0, 128
        %616 = vxpose.xlu0.b32.cont [12/16] 0.0, 128
        %617 = vxpose.xlu0.b32.cont [13/16] 0.0, 128
        %618 = vxpose.xlu0.b32.cont [14/16] 0.0, 128
        %619 = vxpose.xlu0.b32.cont [15/16] 0.0, 128
        %620 = vxpose.xlu0.b32.end [16/16] 0.0, 128
        %v621 = vpop.trf.xlu0
        %v622 = vpop.trf.xlu0
        %v623 = vpop.trf.xlu0
        %v624 = vpop.trf.xlu0
        %v625 = vpop.trf.xlu0
        %v626 = vpop.trf.xlu0
        %v627 = vpop.trf.xlu0
        %v628 = vpop.trf.xlu0
        %v629 = vpop.trf.xlu0
        %v630 = vpop.trf.xlu0
        %v631 = vpop.trf.xlu0
        %v632 = vpop.trf.xlu0
        %v633 = vpop.trf.xlu0
        %v634 = vpop.trf.xlu0
        %v635 = vpop.trf.xlu0
        %v636 = vpop.trf.xlu0
        %637 = vxpose.xlu0.b32.start [1/16] %v540, 128
        %638 = vxpose.xlu0.b32.cont [2/16] %v543, 128
        %639 = vxpose.xlu0.b32.cont [3/16] 0.0, 128
        %640 = vxpose.xlu0.b32.cont [4/16] 0.0, 128
        %641 = vxpose.xlu0.b32.cont [5/16] 0.0, 128
        %642 = vxpose.xlu0.b32.cont [6/16] 0.0, 128
        %643 = vxpose.xlu0.b32.cont [7/16] 0.0, 128
        %644 = vxpose.xlu0.b32.cont [8/16] 0.0, 128
        %645 = vxpose.xlu0.b32.cont [9/16] 0.0, 128
        %646 = vxpose.xlu0.b32.cont [10/16] 0.0, 128
        %647 = vxpose.xlu0.b32.cont [11/16] 0.0, 128
        %648 = vxpose.xlu0.b32.cont [12/16] 0.0, 128
        %649 = vxpose.xlu0.b32.cont [13/16] 0.0, 128
        %650 = vxpose.xlu0.b32.cont [14/16] 0.0, 128
        %651 = vxpose.xlu0.b32.cont [15/16] 0.0, 128
        %652 = vxpose.xlu0.b32.end [16/16] 0.0, 128
        %v653 = vpop.trf.xlu0
        %v654 = vpop.trf.xlu0
        %v655 = vpop.trf.xlu0
        %v656 = vpop.trf.xlu0
        %v657 = vpop.trf.xlu0
        %v658 = vpop.trf.xlu0
        %v659 = vpop.trf.xlu0
        %v660 = vpop.trf.xlu0
        %v661 = vpop.trf.xlu0
        %v662 = vpop.trf.xlu0
        %v663 = vpop.trf.xlu0
        %v664 = vpop.trf.xlu0
        %v665 = vpop.trf.xlu0
        %v666 = vpop.trf.xlu0
        %v667 = vpop.trf.xlu0
        %v668 = vpop.trf.xlu0
        %vm669 = vcmask 130048
        %v671 = vsel %vm669, %v621, 0
        %v674 = vsel %vm669, %v622, 0
        %v677 = vsel %vm669, %v623, 0
        %v680 = vsel %vm669, %v624, 0
        %v683 = vsel %vm669, %v625, 0
        %v686 = vsel %vm669, %v626, 0
        %v689 = vsel %vm669, %v627, 0
        %v692 = vsel %vm669, %v628, 0
        %v695 = vsel %vm669, %v629, 0
        %v698 = vsel %vm669, %v630, 0
        %v701 = vsel %vm669, %v631, 0
        %v704 = vsel %vm669, %v632, 0
        %v707 = vsel %vm669, %v633, 0
        %v710 = vsel %vm669, %v634, 0
        %v713 = vsel %vm669, %v635, 0
        %v716 = vsel %vm669, %v636, 0
        %v719 = vsel %vm669, %v653, 0
        %v722 = vsel %vm669, %v654, 0
        %v725 = vsel %vm669, %v655, 0
        %v728 = vsel %vm669, %v656, 0
        %v731 = vsel %vm669, %v657, 0
        %v734 = vsel %vm669, %v658, 0
        %v737 = vsel %vm669, %v659, 0
        %v740 = vsel %vm669, %v660, 0
        %v743 = vsel %vm669, %v661, 0
        %v746 = vsel %vm669, %v662, 0
        %v749 = vsel %vm669, %v663, 0
        %v752 = vsel %vm669, %v664, 0
        %v755 = vsel %vm669, %v665, 0
        %v758 = vsel %vm669, %v666, 0
        %v761 = vsel %vm669, %v667, 0
        %v764 = vsel %vm669, %v668, 0
        %766 = vmatpush.msra.mxu0 0.0
        %767 = vmatpush.msra.mxu0 0.0
        %768 = vmatpush.msra.mxu0 0.0
        %769 = vmatpush.msra.mxu0 0.0
        %770 = vmatpush.msra.mxu0 0.0
        %771 = vmatpush.msra.mxu0 0.0
        %772 = vmatpush.msra.mxu0 0.0
        %773 = vmatpush.msra.mxu0 0.0
        %774 = vmatpush.msra.mxu0 0.0
        %775 = vmatpush.msra.mxu0 0.0
        %776 = vmatpush.msra.mxu0 0.0
        %777 = vmatpush.msra.mxu0 0.0
        %778 = vmatpush.msra.mxu0 0.0
        %779 = vmatpush.msra.mxu0 0.0
        %780 = vmatpush.msra.mxu0 %v593
        %781 = vmatpush.msra.mxu0 %v591
        %782 = vmatmul.f32.gmra.mxu0 %v671
        %v783 = vpop.f32.mrf.mxu0
        %v784 = vadd.f32 0.0, %v783
        %785 = vmatmul.f32.gmra.mxu0 %v674
        %v786 = vpop.f32.mrf.mxu0
        %v787 = vadd.f32 0.0, %v786
        %788 = vmatmul.f32.gmra.mxu0 %v677
        %v789 = vpop.f32.mrf.mxu0
        %v790 = vadd.f32 0.0, %v789
        %791 = vmatmul.f32.gmra.mxu0 %v680
        %v792 = vpop.f32.mrf.mxu0
        %v793 = vadd.f32 0.0, %v792
        %794 = vmatmul.f32.gmra.mxu0 %v683
        %v795 = vpop.f32.mrf.mxu0
        %v796 = vadd.f32 0.0, %v795
        %797 = vmatmul.f32.gmra.mxu0 %v686
        %v798 = vpop.f32.mrf.mxu0
        %v799 = vadd.f32 0.0, %v798
        %800 = vmatmul.f32.gmra.mxu0 %v689
        %v801 = vpop.f32.mrf.mxu0
        %v802 = vadd.f32 0.0, %v801
        %803 = vmatmul.f32.gmra.mxu0 %v692
        %v804 = vpop.f32.mrf.mxu0
        %v805 = vadd.f32 0.0, %v804
        %806 = vmatmul.f32.gmra.mxu0 %v695
        %v807 = vpop.f32.mrf.mxu0
        %v808 = vadd.f32 0.0, %v807
        %809 = vmatmul.f32.gmra.mxu0 %v698
        %v810 = vpop.f32.mrf.mxu0
        %v811 = vadd.f32 0.0, %v810
        %812 = vmatmul.f32.gmra.mxu0 %v701
        %v813 = vpop.f32.mrf.mxu0
        %v814 = vadd.f32 0.0, %v813
        %815 = vmatmul.f32.gmra.mxu0 %v704
        %v816 = vpop.f32.mrf.mxu0
        %v817 = vadd.f32 0.0, %v816
        %818 = vmatmul.f32.gmra.mxu0 %v707
        %v819 = vpop.f32.mrf.mxu0
        %v820 = vadd.f32 0.0, %v819
        %821 = vmatmul.f32.gmra.mxu0 %v710
        %v822 = vpop.f32.mrf.mxu0
        %v823 = vadd.f32 0.0, %v822
        %824 = vmatmul.f32.gmra.mxu0 %v713
        %v825 = vpop.f32.mrf.mxu0
        %v826 = vadd.f32 0.0, %v825
        %827 = vmatmul.f32.gmra.mxu0 %v716
        %v828 = vpop.f32.mrf.mxu0
        %v829 = vadd.f32 0.0, %v828
        %830 = vmatmul.f32.gmra.mxu0 %v719
        %v831 = vpop.f32.mrf.mxu0
        %v832 = vadd.f32 0.0, %v831
        %833 = vmatmul.f32.gmra.mxu0 %v722
        %v834 = vpop.f32.mrf.mxu0
        %v835 = vadd.f32 0.0, %v834
        %836 = vmatmul.f32.gmra.mxu0 %v725
        %v837 = vpop.f32.mrf.mxu0
        %v838 = vadd.f32 0.0, %v837
        %839 = vmatmul.f32.gmra.mxu0 %v728
        %v840 = vpop.f32.mrf.mxu0
        %v841 = vadd.f32 0.0, %v840
        %842 = vmatmul.f32.gmra.mxu0 %v731
        %v843 = vpop.f32.mrf.mxu0
        %v844 = vadd.f32 0.0, %v843
        %845 = vmatmul.f32.gmra.mxu0 %v734
        %v846 = vpop.f32.mrf.mxu0
        %v847 = vadd.f32 0.0, %v846
        %848 = vmatmul.f32.gmra.mxu0 %v737
        %v849 = vpop.f32.mrf.mxu0
        %v850 = vadd.f32 0.0, %v849
        %851 = vmatmul.f32.gmra.mxu0 %v740
        %v852 = vpop.f32.mrf.mxu0
        %v853 = vadd.f32 0.0, %v852
        %854 = vmatmul.f32.gmra.mxu0 %v743
        %v855 = vpop.f32.mrf.mxu0
        %v856 = vadd.f32 0.0, %v855
        %857 = vmatmul.f32.gmra.mxu0 %v746
        %v858 = vpop.f32.mrf.mxu0
        %v859 = vadd.f32 0.0, %v858
        %860 = vmatmul.f32.gmra.mxu0 %v749
        %v861 = vpop.f32.mrf.mxu0
        %v862 = vadd.f32 0.0, %v861
        %863 = vmatmul.f32.gmra.mxu0 %v752
        %v864 = vpop.f32.mrf.mxu0
        %v865 = vadd.f32 0.0, %v864
        %866 = vmatmul.f32.gmra.mxu0 %v755
        %v867 = vpop.f32.mrf.mxu0
        %v868 = vadd.f32 0.0, %v867
        %869 = vmatmul.f32.gmra.mxu0 %v758
        %v870 = vpop.f32.mrf.mxu0
        %v871 = vadd.f32 0.0, %v870
        %872 = vmatmul.f32.gmra.mxu0 %v761
        %v873 = vpop.f32.mrf.mxu0
        %v874 = vadd.f32 0.0, %v873
        %875 = vmatmul.f32.gmra.mxu0 %v764
        %v876 = vpop.f32.mrf.mxu0
        %v877 = vadd.f32 0.0, %v876
        %878 = vdwg.mxu0
        %879 = vmatpush.msra.mxu0 0.0
        %880 = vmatpush.msra.mxu0 0.0
        %881 = vmatpush.msra.mxu0 0.0
        %882 = vmatpush.msra.mxu0 0.0
        %883 = vmatpush.msra.mxu0 0.0
        %884 = vmatpush.msra.mxu0 0.0
        %885 = vmatpush.msra.mxu0 0.0
        %886 = vmatpush.msra.mxu0 0.0
        %887 = vmatpush.msra.mxu0 0.0
        %888 = vmatpush.msra.mxu0 0.0
        %889 = vmatpush.msra.mxu0 0.0
        %890 = vmatpush.msra.mxu0 0.0
        %891 = vmatpush.msra.mxu0 0.0
        %892 = vmatpush.msra.mxu0 0.0
        %893 = vmatpush.msra.mxu0 %v594
        %894 = vmatpush.msra.mxu0 %v592
        %895 = vmatmul.f32.gmra.mxu0 %v671
        %v896 = vpop.f32.mrf.mxu0
        %v897 = vadd.f32 0.0, %v896
        %898 = vmatmul.f32.gmra.mxu0 %v674
        %v899 = vpop.f32.mrf.mxu0
        %v900 = vadd.f32 0.0, %v899
        %901 = vmatmul.f32.gmra.mxu0 %v677
        %v902 = vpop.f32.mrf.mxu0
        %v903 = vadd.f32 0.0, %v902
        %904 = vmatmul.f32.gmra.mxu0 %v680
        %v905 = vpop.f32.mrf.mxu0
        %v906 = vadd.f32 0.0, %v905
        %907 = vmatmul.f32.gmra.mxu0 %v683
        %v908 = vpop.f32.mrf.mxu0
        %v909 = vadd.f32 0.0, %v908
        %910 = vmatmul.f32.gmra.mxu0 %v686
        %v911 = vpop.f32.mrf.mxu0
        %v912 = vadd.f32 0.0, %v911
        %913 = vmatmul.f32.gmra.mxu0 %v689
        %v914 = vpop.f32.mrf.mxu0
        %v915 = vadd.f32 0.0, %v914
        %916 = vmatmul.f32.gmra.mxu0 %v692
        %v917 = vpop.f32.mrf.mxu0
        %v918 = vadd.f32 0.0, %v917
        %919 = vmatmul.f32.gmra.mxu0 %v695
        %v920 = vpop.f32.mrf.mxu0
        %v921 = vadd.f32 0.0, %v920
        %922 = vmatmul.f32.gmra.mxu0 %v698
        %v923 = vpop.f32.mrf.mxu0
        %v924 = vadd.f32 0.0, %v923
        %925 = vmatmul.f32.gmra.mxu0 %v701
        %v926 = vpop.f32.mrf.mxu0
        %v927 = vadd.f32 0.0, %v926
        %928 = vmatmul.f32.gmra.mxu0 %v704
        %v929 = vpop.f32.mrf.mxu0
        %v930 = vadd.f32 0.0, %v929
        %931 = vmatmul.f32.gmra.mxu0 %v707
        %v932 = vpop.f32.mrf.mxu0
        %v933 = vadd.f32 0.0, %v932
        %934 = vmatmul.f32.gmra.mxu0 %v710
        %v935 = vpop.f32.mrf.mxu0
        %v936 = vadd.f32 0.0, %v935
        %937 = vmatmul.f32.gmra.mxu0 %v713
        %v938 = vpop.f32.mrf.mxu0
        %v939 = vadd.f32 0.0, %v938
        %940 = vmatmul.f32.gmra.mxu0 %v716
        %v941 = vpop.f32.mrf.mxu0
        %v942 = vadd.f32 0.0, %v941
        %943 = vmatmul.f32.gmra.mxu0 %v719
        %v944 = vpop.f32.mrf.mxu0
        %v945 = vadd.f32 0.0, %v944
        %946 = vmatmul.f32.gmra.mxu0 %v722
        %v947 = vpop.f32.mrf.mxu0
        %v948 = vadd.f32 0.0, %v947
        %949 = vmatmul.f32.gmra.mxu0 %v725
        %v950 = vpop.f32.mrf.mxu0
        %v951 = vadd.f32 0.0, %v950
        %952 = vmatmul.f32.gmra.mxu0 %v728
        %v953 = vpop.f32.mrf.mxu0
        %v954 = vadd.f32 0.0, %v953
        %955 = vmatmul.f32.gmra.mxu0 %v731
        %v956 = vpop.f32.mrf.mxu0
        %v957 = vadd.f32 0.0, %v956
        %958 = vmatmul.f32.gmra.mxu0 %v734
        %v959 = vpop.f32.mrf.mxu0
        %v960 = vadd.f32 0.0, %v959
        %961 = vmatmul.f32.gmra.mxu0 %v737
        %v962 = vpop.f32.mrf.mxu0
        %v963 = vadd.f32 0.0, %v962
        %964 = vmatmul.f32.gmra.mxu0 %v740
        %v965 = vpop.f32.mrf.mxu0
        %v966 = vadd.f32 0.0, %v965
        %967 = vmatmul.f32.gmra.mxu0 %v743
        %v968 = vpop.f32.mrf.mxu0
        %v969 = vadd.f32 0.0, %v968
        %970 = vmatmul.f32.gmra.mxu0 %v746
        %v971 = vpop.f32.mrf.mxu0
        %v972 = vadd.f32 0.0, %v971
        %973 = vmatmul.f32.gmra.mxu0 %v749
        %v974 = vpop.f32.mrf.mxu0
        %v975 = vadd.f32 0.0, %v974
        %976 = vmatmul.f32.gmra.mxu0 %v752
        %v977 = vpop.f32.mrf.mxu0
        %v978 = vadd.f32 0.0, %v977
        %979 = vmatmul.f32.gmra.mxu0 %v755
        %v980 = vpop.f32.mrf.mxu0
        %v981 = vadd.f32 0.0, %v980
        %982 = vmatmul.f32.gmra.mxu0 %v758
        %v983 = vpop.f32.mrf.mxu0
        %v984 = vadd.f32 0.0, %v983
        %985 = vmatmul.f32.gmra.mxu0 %v761
        %v986 = vpop.f32.mrf.mxu0
        %v987 = vadd.f32 0.0, %v986
        %988 = vmatmul.f32.gmra.mxu0 %v764
        %v989 = vpop.f32.mrf.mxu0
        %v990 = vadd.f32 0.0, %v989
        %991 = vdwg.mxu0
        %v992 = vmax.f32 %v784, %v897
        %993 = vmax.xlane.f32.xlu0 %v992
        %v994 = vpop.xlane.xlu0 %993
        %v995 = vmax.f32 %v787, %v900
        %996 = vmax.xlane.f32.xlu0 %v995
        %v997 = vpop.xlane.xlu0 %996
        %v998 = vmax.f32 %v790, %v903
        %999 = vmax.xlane.f32.xlu0 %v998
        %v1000 = vpop.xlane.xlu0 %999
        %v1001 = vmax.f32 %v793, %v906
        %1002 = vmax.xlane.f32.xlu0 %v1001
        %v1003 = vpop.xlane.xlu0 %1002
        %v1004 = vmax.f32 %v796, %v909
        %1005 = vmax.xlane.f32.xlu0 %v1004
        %v1006 = vpop.xlane.xlu0 %1005
        %v1007 = vmax.f32 %v799, %v912
        %1008 = vmax.xlane.f32.xlu0 %v1007
        %v1009 = vpop.xlane.xlu0 %1008
        %v1010 = vmax.f32 %v802, %v915
        %1011 = vmax.xlane.f32.xlu0 %v1010
        %v1012 = vpop.xlane.xlu0 %1011
        %v1013 = vmax.f32 %v805, %v918
        %1014 = vmax.xlane.f32.xlu0 %v1013
        %v1015 = vpop.xlane.xlu0 %1014
        %v1016 = vmax.f32 %v808, %v921
        %1017 = vmax.xlane.f32.xlu0 %v1016
        %v1018 = vpop.xlane.xlu0 %1017
        %v1019 = vmax.f32 %v811, %v924
        %1020 = vmax.xlane.f32.xlu0 %v1019
        %v1021 = vpop.xlane.xlu0 %1020
        %v1022 = vmax.f32 %v814, %v927
        %1023 = vmax.xlane.f32.xlu0 %v1022
        %v1024 = vpop.xlane.xlu0 %1023
        %v1025 = vmax.f32 %v817, %v930
        %1026 = vmax.xlane.f32.xlu0 %v1025
        %v1027 = vpop.xlane.xlu0 %1026
        %v1028 = vmax.f32 %v820, %v933
        %1029 = vmax.xlane.f32.xlu0 %v1028
        %v1030 = vpop.xlane.xlu0 %1029
        %v1031 = vmax.f32 %v823, %v936
        %1032 = vmax.xlane.f32.xlu0 %v1031
        %v1033 = vpop.xlane.xlu0 %1032
        %v1034 = vmax.f32 %v826, %v939
        %1035 = vmax.xlane.f32.xlu0 %v1034
        %v1036 = vpop.xlane.xlu0 %1035
        %v1037 = vmax.f32 %v829, %v942
        %1038 = vmax.xlane.f32.xlu0 %v1037
        %v1039 = vpop.xlane.xlu0 %1038
        %v1040 = vmax.f32 %v832, %v945
        %1041 = vmax.xlane.f32.xlu0 %v1040
        %v1042 = vpop.xlane.xlu0 %1041
        %v1043 = vmax.f32 %v835, %v948
        %1044 = vmax.xlane.f32.xlu0 %v1043
        %v1045 = vpop.xlane.xlu0 %1044
        %v1046 = vmax.f32 %v838, %v951
        %1047 = vmax.xlane.f32.xlu0 %v1046
        %v1048 = vpop.xlane.xlu0 %1047
        %v1049 = vmax.f32 %v841, %v954
        %1050 = vmax.xlane.f32.xlu0 %v1049
        %v1051 = vpop.xlane.xlu0 %1050
        %v1052 = vmax.f32 %v844, %v957
        %1053 = vmax.xlane.f32.xlu0 %v1052
        %v1054 = vpop.xlane.xlu0 %1053
        %v1055 = vmax.f32 %v847, %v960
        %1056 = vmax.xlane.f32.xlu0 %v1055
        %v1057 = vpop.xlane.xlu0 %1056
        %v1058 = vmax.f32 %v850, %v963
        %1059 = vmax.xlane.f32.xlu0 %v1058
        %v1060 = vpop.xlane.xlu0 %1059
        %v1061 = vmax.f32 %v853, %v966
        %1062 = vmax.xlane.f32.xlu0 %v1061
        %v1063 = vpop.xlane.xlu0 %1062
        %v1064 = vmax.f32 %v856, %v969
        %1065 = vmax.xlane.f32.xlu0 %v1064
        %v1066 = vpop.xlane.xlu0 %1065
        %v1067 = vmax.f32 %v859, %v972
        %1068 = vmax.xlane.f32.xlu0 %v1067
        %v1069 = vpop.xlane.xlu0 %1068
        %v1070 = vmax.f32 %v862, %v975
        %1071 = vmax.xlane.f32.xlu0 %v1070
        %v1072 = vpop.xlane.xlu0 %1071
        %v1073 = vmax.f32 %v865, %v978
        %1074 = vmax.xlane.f32.xlu0 %v1073
        %v1075 = vpop.xlane.xlu0 %1074
        %v1076 = vmax.f32 %v868, %v981
        %1077 = vmax.xlane.f32.xlu0 %v1076
        %v1078 = vpop.xlane.xlu0 %1077
        %v1079 = vmax.f32 %v871, %v984
        %1080 = vmax.xlane.f32.xlu0 %v1079
        %v1081 = vpop.xlane.xlu0 %1080
        %v1082 = vmax.f32 %v874, %v987
        %1083 = vmax.xlane.f32.xlu0 %v1082
        %v1084 = vpop.xlane.xlu0 %1083
        %v1085 = vmax.f32 %v877, %v990
        %1086 = vmax.xlane.f32.xlu0 %v1085
        %v1087 = vpop.xlane.xlu0 %1086
        %v1088 = vsub.f32 %v784, %v994
        %v1089 = vsub.f32 %v897, %v994
        %v1090 = vsub.f32 %v787, %v997
        %v1091 = vsub.f32 %v900, %v997
        %v1092 = vsub.f32 %v790, %v1000
        %v1093 = vsub.f32 %v903, %v1000
        %v1094 = vsub.f32 %v793, %v1003
        %v1095 = vsub.f32 %v906, %v1003
        %v1096 = vsub.f32 %v796, %v1006
        %v1097 = vsub.f32 %v909, %v1006
        %v1098 = vsub.f32 %v799, %v1009
        %v1099 = vsub.f32 %v912, %v1009
        %v1100 = vsub.f32 %v802, %v1012
        %v1101 = vsub.f32 %v915, %v1012
        %v1102 = vsub.f32 %v805, %v1015
        %v1103 = vsub.f32 %v918, %v1015
        %v1104 = vsub.f32 %v808, %v1018
        %v1105 = vsub.f32 %v921, %v1018
        %v1106 = vsub.f32 %v811, %v1021
        %v1107 = vsub.f32 %v924, %v1021
        %v1108 = vsub.f32 %v814, %v1024
        %v1109 = vsub.f32 %v927, %v1024
        %v1110 = vsub.f32 %v817, %v1027
        %v1111 = vsub.f32 %v930, %v1027
        %v1112 = vsub.f32 %v820, %v1030
        %v1113 = vsub.f32 %v933, %v1030
        %v1114 = vsub.f32 %v823, %v1033
        %v1115 = vsub.f32 %v936, %v1033
        %v1116 = vsub.f32 %v826, %v1036
        %v1117 = vsub.f32 %v939, %v1036
        %v1118 = vsub.f32 %v829, %v1039
        %v1119 = vsub.f32 %v942, %v1039
        %v1120 = vsub.f32 %v832, %v1042
        %v1121 = vsub.f32 %v945, %v1042
        %v1122 = vsub.f32 %v835, %v1045
        %v1123 = vsub.f32 %v948, %v1045
        %v1124 = vsub.f32 %v838, %v1048
        %v1125 = vsub.f32 %v951, %v1048
        %v1126 = vsub.f32 %v841, %v1051
        %v1127 = vsub.f32 %v954, %v1051
        %v1128 = vsub.f32 %v844, %v1054
        %v1129 = vsub.f32 %v957, %v1054
        %v1130 = vsub.f32 %v847, %v1057
        %v1131 = vsub.f32 %v960, %v1057
        %v1132 = vsub.f32 %v850, %v1060
        %v1133 = vsub.f32 %v963, %v1060
        %v1134 = vsub.f32 %v853, %v1063
        %v1135 = vsub.f32 %v966, %v1063
        %v1136 = vsub.f32 %v856, %v1066
        %v1137 = vsub.f32 %v969, %v1066
        %v1138 = vsub.f32 %v859, %v1069
        %v1139 = vsub.f32 %v972, %v1069
        %v1140 = vsub.f32 %v862, %v1072
        %v1141 = vsub.f32 %v975, %v1072
        %v1142 = vsub.f32 %v865, %v1075
        %v1143 = vsub.f32 %v978, %v1075
        %v1144 = vsub.f32 %v868, %v1078
        %v1145 = vsub.f32 %v981, %v1078
        %v1146 = vsub.f32 %v871, %v1081
        %v1147 = vsub.f32 %v984, %v1081
        %v1148 = vsub.f32 %v874, %v1084
        %v1149 = vsub.f32 %v987, %v1084
        %v1150 = vsub.f32 %v877, %v1087
        %v1151 = vsub.f32 %v990, %v1087
        %v1152 = vmul.f32 %v1088, 1.442695
        %v1153 = vpow.pop %v1152
        %v1154 = vmul.f32 %v1089, 1.442695
        %v1155 = vpow.pop %v1154
        %v1156 = vmul.f32 %v1090, 1.442695
        %v1157 = vpow.pop %v1156
        %v1158 = vmul.f32 %v1091, 1.442695
        %v1159 = vpow.pop %v1158
        %v1160 = vmul.f32 %v1092, 1.442695
        %v1161 = vpow.pop %v1160
        %v1162 = vmul.f32 %v1093, 1.442695
        %v1163 = vpow.pop %v1162
        %v1164 = vmul.f32 %v1094, 1.442695
        %v1165 = vpow.pop %v1164
        %v1166 = vmul.f32 %v1095, 1.442695
        %v1167 = vpow.pop %v1166
        %v1168 = vmul.f32 %v1096, 1.442695
        %v1169 = vpow.pop %v1168
        %v1170 = vmul.f32 %v1097, 1.442695
        %v1171 = vpow.pop %v1170
        %v1172 = vmul.f32 %v1098, 1.442695
        %v1173 = vpow.pop %v1172
        %v1174 = vmul.f32 %v1099, 1.442695
        %v1175 = vpow.pop %v1174
        %v1176 = vmul.f32 %v1100, 1.442695
        %v1177 = vpow.pop %v1176
        %v1178 = vmul.f32 %v1101, 1.442695
        %v1179 = vpow.pop %v1178
        %v1180 = vmul.f32 %v1102, 1.442695
        %v1181 = vpow.pop %v1180
        %v1182 = vmul.f32 %v1103, 1.442695
        %v1183 = vpow.pop %v1182
        %v1184 = vmul.f32 %v1104, 1.442695
        %v1185 = vpow.pop %v1184
        %v1186 = vmul.f32 %v1105, 1.442695
        %v1187 = vpow.pop %v1186
        %v1188 = vmul.f32 %v1106, 1.442695
        %v1189 = vpow.pop %v1188
        %v1190 = vmul.f32 %v1107, 1.442695
        %v1191 = vpow.pop %v1190
        %v1192 = vmul.f32 %v1108, 1.442695
        %v1193 = vpow.pop %v1192
        %v1194 = vmul.f32 %v1109, 1.442695
        %v1195 = vpow.pop %v1194
        %v1196 = vmul.f32 %v1110, 1.442695
        %v1197 = vpow.pop %v1196
        %v1198 = vmul.f32 %v1111, 1.442695
        %v1199 = vpow.pop %v1198
        %v1200 = vmul.f32 %v1112, 1.442695
        %v1201 = vpow.pop %v1200
        %v1202 = vmul.f32 %v1113, 1.442695
        %v1203 = vpow.pop %v1202
        %v1204 = vmul.f32 %v1114, 1.442695
        %v1205 = vpow.pop %v1204
        %v1206 = vmul.f32 %v1115, 1.442695
        %v1207 = vpow.pop %v1206
        %v1208 = vmul.f32 %v1116, 1.442695
        %v1209 = vpow.pop %v1208
        %v1210 = vmul.f32 %v1117, 1.442695
        %v1211 = vpow.pop %v1210
        %v1212 = vmul.f32 %v1118, 1.442695
        %v1213 = vpow.pop %v1212
        %v1214 = vmul.f32 %v1119, 1.442695
        %v1215 = vpow.pop %v1214
        %v1216 = vmul.f32 %v1120, 1.442695
        %v1217 = vpow.pop %v1216
        %v1218 = vmul.f32 %v1121, 1.442695
        %v1219 = vpow.pop %v1218
        %v1220 = vmul.f32 %v1122, 1.442695
        %v1221 = vpow.pop %v1220
        %v1222 = vmul.f32 %v1123, 1.442695
        %v1223 = vpow.pop %v1222
        %v1224 = vmul.f32 %v1124, 1.442695
        %v1225 = vpow.pop %v1224
        %v1226 = vmul.f32 %v1125, 1.442695
        %v1227 = vpow.pop %v1226
        %v1228 = vmul.f32 %v1126, 1.442695
        %v1229 = vpow.pop %v1228
        %v1230 = vmul.f32 %v1127, 1.442695
        %v1231 = vpow.pop %v1230
        %v1232 = vmul.f32 %v1128, 1.442695
        %v1233 = vpow.pop %v1232
        %v1234 = vmul.f32 %v1129, 1.442695
        %v1235 = vpow.pop %v1234
        %v1236 = vmul.f32 %v1130, 1.442695
        %v1237 = vpow.pop %v1236
        %v1238 = vmul.f32 %v1131, 1.442695
        %v1239 = vpow.pop %v1238
        %v1240 = vmul.f32 %v1132, 1.442695
        %v1241 = vpow.pop %v1240
        %v1242 = vmul.f32 %v1133, 1.442695
        %v1243 = vpow.pop %v1242
        %v1244 = vmul.f32 %v1134, 1.442695
        %v1245 = vpow.pop %v1244
        %v1246 = vmul.f32 %v1135, 1.442695
        %v1247 = vpow.pop %v1246
        %v1248 = vmul.f32 %v1136, 1.442695
        %v1249 = vpow.pop %v1248
        %v1250 = vmul.f32 %v1137, 1.442695
        %v1251 = vpow.pop %v1250
        %v1252 = vmul.f32 %v1138, 1.442695
        %v1253 = vpow.pop %v1252
        %v1254 = vmul.f32 %v1139, 1.442695
        %v1255 = vpow.pop %v1254
        %v1256 = vmul.f32 %v1140, 1.442695
        %v1257 = vpow.pop %v1256
        %v1258 = vmul.f32 %v1141, 1.442695
        %v1259 = vpow.pop %v1258
        %v1260 = vmul.f32 %v1142, 1.442695
        %v1261 = vpow.pop %v1260
        %v1262 = vmul.f32 %v1143, 1.442695
        %v1263 = vpow.pop %v1262
        %v1264 = vmul.f32 %v1144, 1.442695
        %v1265 = vpow.pop %v1264
        %v1266 = vmul.f32 %v1145, 1.442695
        %v1267 = vpow.pop %v1266
        %v1268 = vmul.f32 %v1146, 1.442695
        %v1269 = vpow.pop %v1268
        %v1270 = vmul.f32 %v1147, 1.442695
        %v1271 = vpow.pop %v1270
        %v1272 = vmul.f32 %v1148, 1.442695
        %v1273 = vpow.pop %v1272
        %v1274 = vmul.f32 %v1149, 1.442695
        %v1275 = vpow.pop %v1274
        %v1276 = vmul.f32 %v1150, 1.442695
        %v1277 = vpow.pop %v1276
        %v1278 = vmul.f32 %v1151, 1.442695
        %v1279 = vpow.pop %v1278
        %1280 = vmatpush.xpose.msra.mxu0 %v1213
        %1281 = vmatpush.xpose.msra.mxu0 %v1209
        %1282 = vmatpush.xpose.msra.mxu0 %v1205
        %1283 = vmatpush.xpose.msra.mxu0 %v1201
        %1284 = vmatpush.xpose.msra.mxu0 %v1197
        %1285 = vmatpush.xpose.msra.mxu0 %v1193
        %1286 = vmatpush.xpose.msra.mxu0 %v1189
        %1287 = vmatpush.xpose.msra.mxu0 %v1185
        %1288 = vmatpush.xpose.msra.mxu0 %v1181
        %1289 = vmatpush.xpose.msra.mxu0 %v1177
        %1290 = vmatpush.xpose.msra.mxu0 %v1173
        %1291 = vmatpush.xpose.msra.mxu0 %v1169
        %1292 = vmatpush.xpose.msra.mxu0 %v1165
        %1293 = vmatpush.xpose.msra.mxu0 %v1161
        %1294 = vmatpush.xpose.msra.mxu0 %v1157
        %1295 = vmatpush.xpose.msra.mxu0 %v1153
        %1296 = vmatmul.f32.gmra.mxu0 %v595
        %v1297 = vpop.f32.mrf.mxu0
        %v1298 = vadd.f32 0.0, %v1297
        %1299 = vmatmul.f32.gmra.mxu0 %v597
        %v1300 = vpop.f32.mrf.mxu0
        %v1301 = vadd.f32 0.0, %v1300
        %1302 = vmatmul.f32.gmra.mxu0 %v599
        %v1303 = vpop.f32.mrf.mxu0
        %v1304 = vadd.f32 0.0, %v1303
        %1305 = vmatmul.f32.gmra.mxu0 %v601
        %v1306 = vpop.f32.mrf.mxu0
        %v1307 = vadd.f32 0.0, %v1306
        %1308 = vmatmul.f32.gmra.mxu0 %v603
        %v1309 = vpop.f32.mrf.mxu0
        %v1310 = vadd.f32 0.0, %v1309
        %1311 = vdwg.mxu0
        %1312 = vmatpush.xpose.msra.mxu0 %v1215
        %1313 = vmatpush.xpose.msra.mxu0 %v1211
        %1314 = vmatpush.xpose.msra.mxu0 %v1207
        %1315 = vmatpush.xpose.msra.mxu0 %v1203
        %1316 = vmatpush.xpose.msra.mxu0 %v1199
        %1317 = vmatpush.xpose.msra.mxu0 %v1195
        %1318 = vmatpush.xpose.msra.mxu0 %v1191
        %1319 = vmatpush.xpose.msra.mxu0 %v1187
        %1320 = vmatpush.xpose.msra.mxu0 %v1183
        %1321 = vmatpush.xpose.msra.mxu0 %v1179
        %1322 = vmatpush.xpose.msra.mxu0 %v1175
        %1323 = vmatpush.xpose.msra.mxu0 %v1171
        %1324 = vmatpush.xpose.msra.mxu0 %v1167
        %1325 = vmatpush.xpose.msra.mxu0 %v1163
        %1326 = vmatpush.xpose.msra.mxu0 %v1159
        %1327 = vmatpush.xpose.msra.mxu0 %v1155
        %1328 = vmatmul.f32.gmra.mxu0 %v596
        %v1329 = vpop.f32.mrf.mxu0
        %v1330 = vadd.f32 %v1298, %v1329
        %1331 = vmatmul.f32.gmra.mxu0 %v598
        %v1332 = vpop.f32.mrf.mxu0
        %v1333 = vadd.f32 %v1301, %v1332
        %1334 = vmatmul.f32.gmra.mxu0 %v600
        %v1335 = vpop.f32.mrf.mxu0
        %v1336 = vadd.f32 %v1304, %v1335
        %1337 = vmatmul.f32.gmra.mxu0 %v602
        %v1338 = vpop.f32.mrf.mxu0
        %v1339 = vadd.f32 %v1307, %v1338
        %1340 = vmatmul.f32.gmra.mxu0 %v604
        %v1341 = vpop.f32.mrf.mxu0
        %v1342 = vadd.f32 %v1310, %v1341
        %1343 = vdwg.mxu0
        %1344 = vmatpush.xpose.msra.mxu0 %v1277
        %1345 = vmatpush.xpose.msra.mxu0 %v1273
        %1346 = vmatpush.xpose.msra.mxu0 %v1269
        %1347 = vmatpush.xpose.msra.mxu0 %v1265
        %1348 = vmatpush.xpose.msra.mxu0 %v1261
        %1349 = vmatpush.xpose.msra.mxu0 %v1257
        %1350 = vmatpush.xpose.msra.mxu0 %v1253
        %1351 = vmatpush.xpose.msra.mxu0 %v1249
        %1352 = vmatpush.xpose.msra.mxu0 %v1245
        %1353 = vmatpush.xpose.msra.mxu0 %v1241
        %1354 = vmatpush.xpose.msra.mxu0 %v1237
        %1355 = vmatpush.xpose.msra.mxu0 %v1233
        %1356 = vmatpush.xpose.msra.mxu0 %v1229
        %1357 = vmatpush.xpose.msra.mxu0 %v1225
        %1358 = vmatpush.xpose.msra.mxu0 %v1221
        %1359 = vmatpush.xpose.msra.mxu0 %v1217
        %1360 = vmatmul.f32.gmra.mxu0 %v595
        %v1361 = vpop.f32.mrf.mxu0
        %v1362 = vadd.f32 0.0, %v1361
        %1363 = vmatmul.f32.gmra.mxu0 %v597
        %v1364 = vpop.f32.mrf.mxu0
        %v1365 = vadd.f32 0.0, %v1364
        %1366 = vmatmul.f32.gmra.mxu0 %v599
        %v1367 = vpop.f32.mrf.mxu0
        %v1368 = vadd.f32 0.0, %v1367
        %1369 = vmatmul.f32.gmra.mxu0 %v601
        %v1370 = vpop.f32.mrf.mxu0
        %v1371 = vadd.f32 0.0, %v1370
        %1372 = vmatmul.f32.gmra.mxu0 %v603
        %v1373 = vpop.f32.mrf.mxu0
        %v1374 = vadd.f32 0.0, %v1373
        %1375 = vdwg.mxu0
        %1376 = vmatpush.xpose.msra.mxu0 %v1279
        %1377 = vmatpush.xpose.msra.mxu0 %v1275
        %1378 = vmatpush.xpose.msra.mxu0 %v1271
        %1379 = vmatpush.xpose.msra.mxu0 %v1267
        %1380 = vmatpush.xpose.msra.mxu0 %v1263
        %1381 = vmatpush.xpose.msra.mxu0 %v1259
        %1382 = vmatpush.xpose.msra.mxu0 %v1255
        %1383 = vmatpush.xpose.msra.mxu0 %v1251
        %1384 = vmatpush.xpose.msra.mxu0 %v1247
        %1385 = vmatpush.xpose.msra.mxu0 %v1243
        %1386 = vmatpush.xpose.msra.mxu0 %v1239
        %1387 = vmatpush.xpose.msra.mxu0 %v1235
        %1388 = vmatpush.xpose.msra.mxu0 %v1231
        %1389 = vmatpush.xpose.msra.mxu0 %v1227
        %1390 = vmatpush.xpose.msra.mxu0 %v1223
        %1391 = vmatpush.xpose.msra.mxu0 %v1219
        %1392 = vmatmul.f32.gmra.mxu0 %v596
        %v1393 = vpop.f32.mrf.mxu0
        %v1394 = vadd.f32 %v1362, %v1393
        %1395 = vmatmul.f32.gmra.mxu0 %v598
        %v1396 = vpop.f32.mrf.mxu0
        %v1397 = vadd.f32 %v1365, %v1396
        %1398 = vmatmul.f32.gmra.mxu0 %v600
        %v1399 = vpop.f32.mrf.mxu0
        %v1400 = vadd.f32 %v1368, %v1399
        %1401 = vmatmul.f32.gmra.mxu0 %v602
        %v1402 = vpop.f32.mrf.mxu0
        %v1403 = vadd.f32 %v1371, %v1402
        %1404 = vmatmul.f32.gmra.mxu0 %v604
        %v1405 = vpop.f32.mrf.mxu0
        %v1406 = vadd.f32 %v1374, %v1405
        %1407 = vdwg.mxu0
        %v1408 = vrcp.pop %v1342
        %v1409 = vmul.f32 %v1342, %v1408
        %v1410 = vsub.f32 1.0, %v1409
        %v1411 = vmul.f32 %v1408, %v1410
        %v1412 = vadd.f32 %v1408, %v1411
        %vm1413 = vweird.f32 %v1342
        %vm1414 = vweird.f32 %v1408
        %vm1415 = vmor %vm1413, %vm1414
        %v1416 = vsel %vm1415, %v1408, %v1412
        %v1417 = vand.u32 2147483647, %v1342
        %vm1418 = vcmp.eq.f32.partialorder %v1417, 8.507059e+37
        %v1419 = vand.u32 %v1342, 2147483648
        %v1420 = vor.u32 1.1754944e-38, %v1419
        %v1421 = vsel %vm1418, %v1420, %v1416
        %v1422 = vrcp.pop %v1406
        %v1423 = vmul.f32 %v1406, %v1422
        %v1424 = vsub.f32 1.0, %v1423
        %v1425 = vmul.f32 %v1422, %v1424
        %v1426 = vadd.f32 %v1422, %v1425
        %vm1427 = vweird.f32 %v1406
        %vm1428 = vweird.f32 %v1422
        %vm1429 = vmor %vm1427, %vm1428
        %v1430 = vsel %vm1429, %v1422, %v1426
        %v1431 = vand.u32 2147483647, %v1406
        %vm1432 = vcmp.eq.f32.partialorder %v1431, 8.507059e+37
        %v1433 = vand.u32 %v1406, 2147483648
        %v1434 = vor.u32 1.1754944e-38, %v1433
        %v1435 = vsel %vm1432, %v1434, %v1430
        %v1436 = vperm.slane %v1421, 0
        %v1437 = vperm.slane %v1435, 0
        %v1438 = vmul.f32 %v1330, %v1436
        %v1439 = vmul.f32 %v1394, %v1437
        %v1440 = vmul.f32 %v1333, %v1436
        %v1441 = vmul.f32 %v1397, %v1437
        %v1442 = vmul.f32 %v1336, %v1436
        %v1443 = vmul.f32 %v1400, %v1437
        %v1444 = vmul.f32 %v1339, %v1436
        %v1445 = vmul.f32 %v1403, %v1437
        %1446 = vst [vmem:[%s441] sm:$0xff] %v1438
        %1447 = vst [vmem:[%s441 + $0x8] sm:$0xff] %v1439
        %1448 = vst [vmem:[%s441 + $0x10] sm:$0xff] %v1440
        %1449 = vst [vmem:[%s441 + $0x18] sm:$0xff] %v1441
        %1450 = vst [vmem:[%s441 + $0x20] sm:$0xff] %v1442
        %1451 = vst [vmem:[%s441 + $0x28] sm:$0xff] %v1443
        %1452 = vst [vmem:[%s441 + $0x30] sm:$0xff] %v1444
        %1453 = vst [vmem:[%s441 + $0x38] sm:$0xff] %v1445
        %v1454 = vld [vmem:[%s397] sm:$0xff]
        %v1455 = vld [vmem:[%s397 + $0x8] sm:$0xff]
        %v1456 = vld [vmem:[%s397 + $0x10] sm:$0xff]
        %v1457 = vld [vmem:[%s397 + $0x18] sm:$0xff]
        %v1458 = vld [vmem:[%s367] sm:$0xff]
        %v1459 = vld [vmem:[%s367 + $0x8] sm:$0xff]
        %v1460 = vld [vmem:[%s367 + $0x10] sm:$0xff]
        %v1461 = vld [vmem:[%s367 + $0x18] sm:$0xff]
        %v1462 = vld [vmem:[%s367 + $0x20] sm:$0xff]
        %v1463 = vld [vmem:[%s367 + $0x28] sm:$0xff]
        %v1464 = vld [vmem:[%s367 + $0x30] sm:$0xff]
        %v1465 = vld [vmem:[%s367 + $0x38] sm:$0xff]
        %v1466 = vld [vmem:[%s367 + $0x40] sm:$0xff]
        %v1467 = vld [vmem:[%s367 + $0x48] sm:$0xff]
        %1468 = vxpose.xlu0.b32.start [1/16] %v563, 128
        %1469 = vxpose.xlu0.b32.cont [2/16] %v566, 128
        %1470 = vxpose.xlu0.b32.cont [3/16] 0.0, 128
        %1471 = vxpose.xlu0.b32.cont [4/16] 0.0, 128
        %1472 = vxpose.xlu0.b32.cont [5/16] 0.0, 128
        %1473 = vxpose.xlu0.b32.cont [6/16] 0.0, 128
        %1474 = vxpose.xlu0.b32.cont [7/16] 0.0, 128
        %1475 = vxpose.xlu0.b32.cont [8/16] 0.0, 128
        %1476 = vxpose.xlu0.b32.cont [9/16] 0.0, 128
        %1477 = vxpose.xlu0.b32.cont [10/16] 0.0, 128
        %1478 = vxpose.xlu0.b32.cont [11/16] 0.0, 128
        %1479 = vxpose.xlu0.b32.cont [12/16] 0.0, 128
        %1480 = vxpose.xlu0.b32.cont [13/16] 0.0, 128
        %1481 = vxpose.xlu0.b32.cont [14/16] 0.0, 128
        %1482 = vxpose.xlu0.b32.cont [15/16] 0.0, 128
        %1483 = vxpose.xlu0.b32.end [16/16] 0.0, 128
        %v1484 = vpop.trf.xlu0
        %v1485 = vpop.trf.xlu0
        %v1486 = vpop.trf.xlu0
        %v1487 = vpop.trf.xlu0
        %v1488 = vpop.trf.xlu0
        %v1489 = vpop.trf.xlu0
        %v1490 = vpop.trf.xlu0
        %v1491 = vpop.trf.xlu0
        %v1492 = vpop.trf.xlu0
        %v1493 = vpop.trf.xlu0
        %v1494 = vpop.trf.xlu0
        %v1495 = vpop.trf.xlu0
        %v1496 = vpop.trf.xlu0
        %v1497 = vpop.trf.xlu0
        %v1498 = vpop.trf.xlu0
        %v1499 = vpop.trf.xlu0
        %1500 = vxpose.xlu0.b32.start [1/16] %v586, 128
        %1501 = vxpose.xlu0.b32.cont [2/16] %v589, 128
        %1502 = vxpose.xlu0.b32.cont [3/16] 0.0, 128
        %1503 = vxpose.xlu0.b32.cont [4/16] 0.0, 128
        %1504 = vxpose.xlu0.b32.cont [5/16] 0.0, 128
        %1505 = vxpose.xlu0.b32.cont [6/16] 0.0, 128
        %1506 = vxpose.xlu0.b32.cont [7/16] 0.0, 128
        %1507 = vxpose.xlu0.b32.cont [8/16] 0.0, 128
        %1508 = vxpose.xlu0.b32.cont [9/16] 0.0, 128
        %1509 = vxpose.xlu0.b32.cont [10/16] 0.0, 128
        %1510 = vxpose.xlu0.b32.cont [11/16] 0.0, 128
        %1511 = vxpose.xlu0.b32.cont [12/16] 0.0, 128
        %1512 = vxpose.xlu0.b32.cont [13/16] 0.0, 128
        %1513 = vxpose.xlu0.b32.cont [14/16] 0.0, 128
        %1514 = vxpose.xlu0.b32.cont [15/16] 0.0, 128
        %1515 = vxpose.xlu0.b32.end [16/16] 0.0, 128
        %v1516 = vpop.trf.xlu0
        %v1517 = vpop.trf.xlu0
        %v1518 = vpop.trf.xlu0
        %v1519 = vpop.trf.xlu0
        %v1520 = vpop.trf.xlu0
        %v1521 = vpop.trf.xlu0
        %v1522 = vpop.trf.xlu0
        %v1523 = vpop.trf.xlu0
        %v1524 = vpop.trf.xlu0
        %v1525 = vpop.trf.xlu0
        %v1526 = vpop.trf.xlu0
        %v1527 = vpop.trf.xlu0
        %v1528 = vpop.trf.xlu0
        %v1529 = vpop.trf.xlu0
        %v1530 = vpop.trf.xlu0
        %v1531 = vpop.trf.xlu0
        %v1533 = vsel %vm669, %v1484, 0
        %v1536 = vsel %vm669, %v1485, 0
        %v1539 = vsel %vm669, %v1486, 0
        %v1542 = vsel %vm669, %v1487, 0
        %v1545 = vsel %vm669, %v1488, 0
        %v1548 = vsel %vm669, %v1489, 0
        %v1551 = vsel %vm669, %v1490, 0
        %v1554 = vsel %vm669, %v1491, 0
        %v1557 = vsel %vm669, %v1492, 0
        %v1560 = vsel %vm669, %v1493, 0
        %v1563 = vsel %vm669, %v1494, 0
        %v1566 = vsel %vm669, %v1495, 0
        %v1569 = vsel %vm669, %v1496, 0
        %v1572 = vsel %vm669, %v1497, 0
        %v1575 = vsel %vm669, %v1498, 0
        %v1578 = vsel %vm669, %v1499, 0
        %v1581 = vsel %vm669, %v1516, 0
        %v1584 = vsel %vm669, %v1517, 0
        %v1587 = vsel %vm669, %v1518, 0
        %v1590 = vsel %vm669, %v1519, 0
        %v1593 = vsel %vm669, %v1520, 0
        %v1596 = vsel %vm669, %v1521, 0
        %v1599 = vsel %vm669, %v1522, 0
        %v1602 = vsel %vm669, %v1523, 0
        %v1605 = vsel %vm669, %v1524, 0
        %v1608 = vsel %vm669, %v1525, 0
        %v1611 = vsel %vm669, %v1526, 0
        %v1614 = vsel %vm669, %v1527, 0
        %v1617 = vsel %vm669, %v1528, 0
        %v1620 = vsel %vm669, %v1529, 0
        %v1623 = vsel %vm669, %v1530, 0
        %v1626 = vsel %vm669, %v1531, 0
        %1628 = vmatpush.msra.mxu0 0.0
        %1629 = vmatpush.msra.mxu0 0.0
        %1630 = vmatpush.msra.mxu0 0.0
        %1631 = vmatpush.msra.mxu0 0.0
        %1632 = vmatpush.msra.mxu0 0.0
        %1633 = vmatpush.msra.mxu0 0.0
        %1634 = vmatpush.msra.mxu0 0.0
        %1635 = vmatpush.msra.mxu0 0.0
        %1636 = vmatpush.msra.mxu0 0.0
        %1637 = vmatpush.msra.mxu0 0.0
        %1638 = vmatpush.msra.mxu0 0.0
        %1639 = vmatpush.msra.mxu0 0.0
        %1640 = vmatpush.msra.mxu0 0.0
        %1641 = vmatpush.msra.mxu0 0.0
        %1642 = vmatpush.msra.mxu0 %v1456
        %1643 = vmatpush.msra.mxu0 %v1454
        %1644 = vmatmul.f32.gmra.mxu0 %v1533
        %v1645 = vpop.f32.mrf.mxu0
        %v1646 = vadd.f32 0.0, %v1645
        %1647 = vmatmul.f32.gmra.mxu0 %v1536
        %v1648 = vpop.f32.mrf.mxu0
        %v1649 = vadd.f32 0.0, %v1648
        %1650 = vmatmul.f32.gmra.mxu0 %v1539
        %v1651 = vpop.f32.mrf.mxu0
        %v1652 = vadd.f32 0.0, %v1651
        %1653 = vmatmul.f32.gmra.mxu0 %v1542
        %v1654 = vpop.f32.mrf.mxu0
        %v1655 = vadd.f32 0.0, %v1654
        %1656 = vmatmul.f32.gmra.mxu0 %v1545
        %v1657 = vpop.f32.mrf.mxu0
        %v1658 = vadd.f32 0.0, %v1657
        %1659 = vmatmul.f32.gmra.mxu0 %v1548
        %v1660 = vpop.f32.mrf.mxu0
        %v1661 = vadd.f32 0.0, %v1660
        %1662 = vmatmul.f32.gmra.mxu0 %v1551
        %v1663 = vpop.f32.mrf.mxu0
        %v1664 = vadd.f32 0.0, %v1663
        %1665 = vmatmul.f32.gmra.mxu0 %v1554
        %v1666 = vpop.f32.mrf.mxu0
        %v1667 = vadd.f32 0.0, %v1666
        %1668 = vmatmul.f32.gmra.mxu0 %v1557
        %v1669 = vpop.f32.mrf.mxu0
        %v1670 = vadd.f32 0.0, %v1669
        %1671 = vmatmul.f32.gmra.mxu0 %v1560
        %v1672 = vpop.f32.mrf.mxu0
        %v1673 = vadd.f32 0.0, %v1672
        %1674 = vmatmul.f32.gmra.mxu0 %v1563
        %v1675 = vpop.f32.mrf.mxu0
        %v1676 = vadd.f32 0.0, %v1675
        %1677 = vmatmul.f32.gmra.mxu0 %v1566
        %v1678 = vpop.f32.mrf.mxu0
        %v1679 = vadd.f32 0.0, %v1678
        %1680 = vmatmul.f32.gmra.mxu0 %v1569
        %v1681 = vpop.f32.mrf.mxu0
        %v1682 = vadd.f32 0.0, %v1681
        %1683 = vmatmul.f32.gmra.mxu0 %v1572
        %v1684 = vpop.f32.mrf.mxu0
        %v1685 = vadd.f32 0.0, %v1684
        %1686 = vmatmul.f32.gmra.mxu0 %v1575
        %v1687 = vpop.f32.mrf.mxu0
        %v1688 = vadd.f32 0.0, %v1687
        %1689 = vmatmul.f32.gmra.mxu0 %v1578
        %v1690 = vpop.f32.mrf.mxu0
        %v1691 = vadd.f32 0.0, %v1690
        %1692 = vmatmul.f32.gmra.mxu0 %v1581
        %v1693 = vpop.f32.mrf.mxu0
        %v1694 = vadd.f32 0.0, %v1693
        %1695 = vmatmul.f32.gmra.mxu0 %v1584
        %v1696 = vpop.f32.mrf.mxu0
        %v1697 = vadd.f32 0.0, %v1696
        %1698 = vmatmul.f32.gmra.mxu0 %v1587
        %v1699 = vpop.f32.mrf.mxu0
        %v1700 = vadd.f32 0.0, %v1699
        %1701 = vmatmul.f32.gmra.mxu0 %v1590
        %v1702 = vpop.f32.mrf.mxu0
        %v1703 = vadd.f32 0.0, %v1702
        %1704 = vmatmul.f32.gmra.mxu0 %v1593
        %v1705 = vpop.f32.mrf.mxu0
        %v1706 = vadd.f32 0.0, %v1705
        %1707 = vmatmul.f32.gmra.mxu0 %v1596
        %v1708 = vpop.f32.mrf.mxu0
        %v1709 = vadd.f32 0.0, %v1708
        %1710 = vmatmul.f32.gmra.mxu0 %v1599
        %v1711 = vpop.f32.mrf.mxu0
        %v1712 = vadd.f32 0.0, %v1711
        %1713 = vmatmul.f32.gmra.mxu0 %v1602
        %v1714 = vpop.f32.mrf.mxu0
        %v1715 = vadd.f32 0.0, %v1714
        %1716 = vmatmul.f32.gmra.mxu0 %v1605
        %v1717 = vpop.f32.mrf.mxu0
        %v1718 = vadd.f32 0.0, %v1717
        %1719 = vmatmul.f32.gmra.mxu0 %v1608
        %v1720 = vpop.f32.mrf.mxu0
        %v1721 = vadd.f32 0.0, %v1720
        %1722 = vmatmul.f32.gmra.mxu0 %v1611
        %v1723 = vpop.f32.mrf.mxu0
        %v1724 = vadd.f32 0.0, %v1723
        %1725 = vmatmul.f32.gmra.mxu0 %v1614
        %v1726 = vpop.f32.mrf.mxu0
        %v1727 = vadd.f32 0.0, %v1726
        %1728 = vmatmul.f32.gmra.mxu0 %v1617
        %v1729 = vpop.f32.mrf.mxu0
        %v1730 = vadd.f32 0.0, %v1729
        %1731 = vmatmul.f32.gmra.mxu0 %v1620
        %v1732 = vpop.f32.mrf.mxu0
        %v1733 = vadd.f32 0.0, %v1732
        %1734 = vmatmul.f32.gmra.mxu0 %v1623
        %v1735 = vpop.f32.mrf.mxu0
        %v1736 = vadd.f32 0.0, %v1735
        %1737 = vmatmul.f32.gmra.mxu0 %v1626
        %v1738 = vpop.f32.mrf.mxu0
        %v1739 = vadd.f32 0.0, %v1738
        %1740 = vdwg.mxu0
        %1741 = vmatpush.msra.mxu0 0.0
        %1742 = vmatpush.msra.mxu0 0.0
        %1743 = vmatpush.msra.mxu0 0.0
        %1744 = vmatpush.msra.mxu0 0.0
        %1745 = vmatpush.msra.mxu0 0.0
        %1746 = vmatpush.msra.mxu0 0.0
        %1747 = vmatpush.msra.mxu0 0.0
        %1748 = vmatpush.msra.mxu0 0.0
        %1749 = vmatpush.msra.mxu0 0.0
        %1750 = vmatpush.msra.mxu0 0.0
        %1751 = vmatpush.msra.mxu0 0.0
        %1752 = vmatpush.msra.mxu0 0.0
        %1753 = vmatpush.msra.mxu0 0.0
        %1754 = vmatpush.msra.mxu0 0.0
        %1755 = vmatpush.msra.mxu0 %v1457
        %1756 = vmatpush.msra.mxu0 %v1455
        %1757 = vmatmul.f32.gmra.mxu0 %v1533
        %v1758 = vpop.f32.mrf.mxu0
        %v1759 = vadd.f32 0.0, %v1758
        %1760 = vmatmul.f32.gmra.mxu0 %v1536
        %v1761 = vpop.f32.mrf.mxu0
        %v1762 = vadd.f32 0.0, %v1761
        %1763 = vmatmul.f32.gmra.mxu0 %v1539
        %v1764 = vpop.f32.mrf.mxu0
        %v1765 = vadd.f32 0.0, %v1764
        %1766 = vmatmul.f32.gmra.mxu0 %v1542
        %v1767 = vpop.f32.mrf.mxu0
        %v1768 = vadd.f32 0.0, %v1767
        %1769 = vmatmul.f32.gmra.mxu0 %v1545
        %v1770 = vpop.f32.mrf.mxu0
        %v1771 = vadd.f32 0.0, %v1770
        %1772 = vmatmul.f32.gmra.mxu0 %v1548
        %v1773 = vpop.f32.mrf.mxu0
        %v1774 = vadd.f32 0.0, %v1773
        %1775 = vmatmul.f32.gmra.mxu0 %v1551
        %v1776 = vpop.f32.mrf.mxu0
        %v1777 = vadd.f32 0.0, %v1776
        %1778 = vmatmul.f32.gmra.mxu0 %v1554
        %v1779 = vpop.f32.mrf.mxu0
        %v1780 = vadd.f32 0.0, %v1779
        %1781 = vmatmul.f32.gmra.mxu0 %v1557
        %v1782 = vpop.f32.mrf.mxu0
        %v1783 = vadd.f32 0.0, %v1782
        %1784 = vmatmul.f32.gmra.mxu0 %v1560
        %v1785 = vpop.f32.mrf.mxu0
        %v1786 = vadd.f32 0.0, %v1785
        %1787 = vmatmul.f32.gmra.mxu0 %v1563
        %v1788 = vpop.f32.mrf.mxu0
        %v1789 = vadd.f32 0.0, %v1788
        %1790 = vmatmul.f32.gmra.mxu0 %v1566
        %v1791 = vpop.f32.mrf.mxu0
        %v1792 = vadd.f32 0.0, %v1791
        %1793 = vmatmul.f32.gmra.mxu0 %v1569
        %v1794 = vpop.f32.mrf.mxu0
        %v1795 = vadd.f32 0.0, %v1794
        %1796 = vmatmul.f32.gmra.mxu0 %v1572
        %v1797 = vpop.f32.mrf.mxu0
        %v1798 = vadd.f32 0.0, %v1797
        %1799 = vmatmul.f32.gmra.mxu0 %v1575
        %v1800 = vpop.f32.mrf.mxu0
        %v1801 = vadd.f32 0.0, %v1800
        %1802 = vmatmul.f32.gmra.mxu0 %v1578
        %v1803 = vpop.f32.mrf.mxu0
        %v1804 = vadd.f32 0.0, %v1803
        %1805 = vmatmul.f32.gmra.mxu0 %v1581
        %v1806 = vpop.f32.mrf.mxu0
        %v1807 = vadd.f32 0.0, %v1806
        %1808 = vmatmul.f32.gmra.mxu0 %v1584
        %v1809 = vpop.f32.mrf.mxu0
        %v1810 = vadd.f32 0.0, %v1809
        %1811 = vmatmul.f32.gmra.mxu0 %v1587
        %v1812 = vpop.f32.mrf.mxu0
        %v1813 = vadd.f32 0.0, %v1812
        %1814 = vmatmul.f32.gmra.mxu0 %v1590
        %v1815 = vpop.f32.mrf.mxu0
        %v1816 = vadd.f32 0.0, %v1815
        %1817 = vmatmul.f32.gmra.mxu0 %v1593
        %v1818 = vpop.f32.mrf.mxu0
        %v1819 = vadd.f32 0.0, %v1818
        %1820 = vmatmul.f32.gmra.mxu0 %v1596
        %v1821 = vpop.f32.mrf.mxu0
        %v1822 = vadd.f32 0.0, %v1821
        %1823 = vmatmul.f32.gmra.mxu0 %v1599
        %v1824 = vpop.f32.mrf.mxu0
        %v1825 = vadd.f32 0.0, %v1824
        %1826 = vmatmul.f32.gmra.mxu0 %v1602
        %v1827 = vpop.f32.mrf.mxu0
        %v1828 = vadd.f32 0.0, %v1827
        %1829 = vmatmul.f32.gmra.mxu0 %v1605
        %v1830 = vpop.f32.mrf.mxu0
        %v1831 = vadd.f32 0.0, %v1830
        %1832 = vmatmul.f32.gmra.mxu0 %v1608
        %v1833 = vpop.f32.mrf.mxu0
        %v1834 = vadd.f32 0.0, %v1833
        %1835 = vmatmul.f32.gmra.mxu0 %v1611
        %v1836 = vpop.f32.mrf.mxu0
        %v1837 = vadd.f32 0.0, %v1836
        %1838 = vmatmul.f32.gmra.mxu0 %v1614
        %v1839 = vpop.f32.mrf.mxu0
        %v1840 = vadd.f32 0.0, %v1839
        %1841 = vmatmul.f32.gmra.mxu0 %v1617
        %v1842 = vpop.f32.mrf.mxu0
        %v1843 = vadd.f32 0.0, %v1842
        %1844 = vmatmul.f32.gmra.mxu0 %v1620
        %v1845 = vpop.f32.mrf.mxu0
        %v1846 = vadd.f32 0.0, %v1845
        %1847 = vmatmul.f32.gmra.mxu0 %v1623
        %v1848 = vpop.f32.mrf.mxu0
        %v1849 = vadd.f32 0.0, %v1848
        %1850 = vmatmul.f32.gmra.mxu0 %v1626
        %v1851 = vpop.f32.mrf.mxu0
        %v1852 = vadd.f32 0.0, %v1851
        %1853 = vdwg.mxu0
        %v1854 = vmax.f32 %v1646, %v1759
        %1855 = vmax.xlane.f32.xlu0 %v1854
        %v1856 = vpop.xlane.xlu0 %1855
        %v1857 = vmax.f32 %v1649, %v1762
        %1858 = vmax.xlane.f32.xlu0 %v1857
        %v1859 = vpop.xlane.xlu0 %1858
        %v1860 = vmax.f32 %v1652, %v1765
        %1861 = vmax.xlane.f32.xlu0 %v1860
        %v1862 = vpop.xlane.xlu0 %1861
        %v1863 = vmax.f32 %v1655, %v1768
        %1864 = vmax.xlane.f32.xlu0 %v1863
        %v1865 = vpop.xlane.xlu0 %1864
        %v1866 = vmax.f32 %v1658, %v1771
        %1867 = vmax.xlane.f32.xlu0 %v1866
        %v1868 = vpop.xlane.xlu0 %1867
        %v1869 = vmax.f32 %v1661, %v1774
        %1870 = vmax.xlane.f32.xlu0 %v1869
        %v1871 = vpop.xlane.xlu0 %1870
        %v1872 = vmax.f32 %v1664, %v1777
        %1873 = vmax.xlane.f32.xlu0 %v1872
        %v1874 = vpop.xlane.xlu0 %1873
        %v1875 = vmax.f32 %v1667, %v1780
        %1876 = vmax.xlane.f32.xlu0 %v1875
        %v1877 = vpop.xlane.xlu0 %1876
        %v1878 = vmax.f32 %v1670, %v1783
        %1879 = vmax.xlane.f32.xlu0 %v1878
        %v1880 = vpop.xlane.xlu0 %1879
        %v1881 = vmax.f32 %v1673, %v1786
        %1882 = vmax.xlane.f32.xlu0 %v1881
        %v1883 = vpop.xlane.xlu0 %1882
        %v1884 = vmax.f32 %v1676, %v1789
        %1885 = vmax.xlane.f32.xlu0 %v1884
        %v1886 = vpop.xlane.xlu0 %1885
        %v1887 = vmax.f32 %v1679, %v1792
        %1888 = vmax.xlane.f32.xlu0 %v1887
        %v1889 = vpop.xlane.xlu0 %1888
        %v1890 = vmax.f32 %v1682, %v1795
        %1891 = vmax.xlane.f32.xlu0 %v1890
        %v1892 = vpop.xlane.xlu0 %1891
        %v1893 = vmax.f32 %v1685, %v1798
        %1894 = vmax.xlane.f32.xlu0 %v1893
        %v1895 = vpop.xlane.xlu0 %1894
        %v1896 = vmax.f32 %v1688, %v1801
        %1897 = vmax.xlane.f32.xlu0 %v1896
        %v1898 = vpop.xlane.xlu0 %1897
        %v1899 = vmax.f32 %v1691, %v1804
        %1900 = vmax.xlane.f32.xlu0 %v1899
        %v1901 = vpop.xlane.xlu0 %1900
        %v1902 = vmax.f32 %v1694, %v1807
        %1903 = vmax.xlane.f32.xlu0 %v1902
        %v1904 = vpop.xlane.xlu0 %1903
        %v1905 = vmax.f32 %v1697, %v1810
        %1906 = vmax.xlane.f32.xlu0 %v1905
        %v1907 = vpop.xlane.xlu0 %1906
        %v1908 = vmax.f32 %v1700, %v1813
        %1909 = vmax.xlane.f32.xlu0 %v1908
        %v1910 = vpop.xlane.xlu0 %1909
        %v1911 = vmax.f32 %v1703, %v1816
        %1912 = vmax.xlane.f32.xlu0 %v1911
        %v1913 = vpop.xlane.xlu0 %1912
        %v1914 = vmax.f32 %v1706, %v1819
        %1915 = vmax.xlane.f32.xlu0 %v1914
        %v1916 = vpop.xlane.xlu0 %1915
        %v1917 = vmax.f32 %v1709, %v1822
        %1918 = vmax.xlane.f32.xlu0 %v1917
        %v1919 = vpop.xlane.xlu0 %1918
        %v1920 = vmax.f32 %v1712, %v1825
        %1921 = vmax.xlane.f32.xlu0 %v1920
        %v1922 = vpop.xlane.xlu0 %1921
        %v1923 = vmax.f32 %v1715, %v1828
        %1924 = vmax.xlane.f32.xlu0 %v1923
        %v1925 = vpop.xlane.xlu0 %1924
        %v1926 = vmax.f32 %v1718, %v1831
        %1927 = vmax.xlane.f32.xlu0 %v1926
        %v1928 = vpop.xlane.xlu0 %1927
        %v1929 = vmax.f32 %v1721, %v1834
        %1930 = vmax.xlane.f32.xlu0 %v1929
        %v1931 = vpop.xlane.xlu0 %1930
        %v1932 = vmax.f32 %v1724, %v1837
        %1933 = vmax.xlane.f32.xlu0 %v1932
        %v1934 = vpop.xlane.xlu0 %1933
        %v1935 = vmax.f32 %v1727, %v1840
        %1936 = vmax.xlane.f32.xlu0 %v1935
        %v1937 = vpop.xlane.xlu0 %1936
        %v1938 = vmax.f32 %v1730, %v1843
        %1939 = vmax.xlane.f32.xlu0 %v1938
        %v1940 = vpop.xlane.xlu0 %1939
        %v1941 = vmax.f32 %v1733, %v1846
        %1942 = vmax.xlane.f32.xlu0 %v1941
        %v1943 = vpop.xlane.xlu0 %1942
        %v1944 = vmax.f32 %v1736, %v1849
        %1945 = vmax.xlane.f32.xlu0 %v1944
        %v1946 = vpop.xlane.xlu0 %1945
        %v1947 = vmax.f32 %v1739, %v1852
        %1948 = vmax.xlane.f32.xlu0 %v1947
        %v1949 = vpop.xlane.xlu0 %1948
        %v1950 = vsub.f32 %v1646, %v1856
        %v1951 = vsub.f32 %v1759, %v1856
        %v1952 = vsub.f32 %v1649, %v1859
        %v1953 = vsub.f32 %v1762, %v1859
        %v1954 = vsub.f32 %v1652, %v1862
        %v1955 = vsub.f32 %v1765, %v1862
        %v1956 = vsub.f32 %v1655, %v1865
        %v1957 = vsub.f32 %v1768, %v1865
        %v1958 = vsub.f32 %v1658, %v1868
        %v1959 = vsub.f32 %v1771, %v1868
        %v1960 = vsub.f32 %v1661, %v1871
        %v1961 = vsub.f32 %v1774, %v1871
        %v1962 = vsub.f32 %v1664, %v1874
        %v1963 = vsub.f32 %v1777, %v1874
        %v1964 = vsub.f32 %v1667, %v1877
        %v1965 = vsub.f32 %v1780, %v1877
        %v1966 = vsub.f32 %v1670, %v1880
        %v1967 = vsub.f32 %v1783, %v1880
        %v1968 = vsub.f32 %v1673, %v1883
        %v1969 = vsub.f32 %v1786, %v1883
        %v1970 = vsub.f32 %v1676, %v1886
        %v1971 = vsub.f32 %v1789, %v1886
        %v1972 = vsub.f32 %v1679, %v1889
        %v1973 = vsub.f32 %v1792, %v1889
        %v1974 = vsub.f32 %v1682, %v1892
        %v1975 = vsub.f32 %v1795, %v1892
        %v1976 = vsub.f32 %v1685, %v1895
        %v1977 = vsub.f32 %v1798, %v1895
        %v1978 = vsub.f32 %v1688, %v1898
        %v1979 = vsub.f32 %v1801, %v1898
        %v1980 = vsub.f32 %v1691, %v1901
        %v1981 = vsub.f32 %v1804, %v1901
        %v1982 = vsub.f32 %v1694, %v1904
        %v1983 = vsub.f32 %v1807, %v1904
        %v1984 = vsub.f32 %v1697, %v1907
        %v1985 = vsub.f32 %v1810, %v1907
        %v1986 = vsub.f32 %v1700, %v1910
        %v1987 = vsub.f32 %v1813, %v1910
        %v1988 = vsub.f32 %v1703, %v1913
        %v1989 = vsub.f32 %v1816, %v1913
        %v1990 = vsub.f32 %v1706, %v1916
        %v1991 = vsub.f32 %v1819, %v1916
        %v1992 = vsub.f32 %v1709, %v1919
        %v1993 = vsub.f32 %v1822, %v1919
        %v1994 = vsub.f32 %v1712, %v1922
        %v1995 = vsub.f32 %v1825, %v1922
        %v1996 = vsub.f32 %v1715, %v1925
        %v1997 = vsub.f32 %v1828, %v1925
        %v1998 = vsub.f32 %v1718, %v1928
        %v1999 = vsub.f32 %v1831, %v1928
        %v2000 = vsub.f32 %v1721, %v1931
        %v2001 = vsub.f32 %v1834, %v1931
        %v2002 = vsub.f32 %v1724, %v1934
        %v2003 = vsub.f32 %v1837, %v1934
        %v2004 = vsub.f32 %v1727, %v1937
        %v2005 = vsub.f32 %v1840, %v1937
        %v2006 = vsub.f32 %v1730, %v1940
        %v2007 = vsub.f32 %v1843, %v1940
        %v2008 = vsub.f32 %v1733, %v1943
        %v2009 = vsub.f32 %v1846, %v1943
        %v2010 = vsub.f32 %v1736, %v1946
        %v2011 = vsub.f32 %v1849, %v1946
        %v2012 = vsub.f32 %v1739, %v1949
        %v2013 = vsub.f32 %v1852, %v1949
        %v2014 = vmul.f32 %v1950, 1.442695
        %v2015 = vpow.pop %v2014
        %v2016 = vmul.f32 %v1951, 1.442695
        %v2017 = vpow.pop %v2016
        %v2018 = vmul.f32 %v1952, 1.442695
        %v2019 = vpow.pop %v2018
        %v2020 = vmul.f32 %v1953, 1.442695
        %v2021 = vpow.pop %v2020
        %v2022 = vmul.f32 %v1954, 1.442695
        %v2023 = vpow.pop %v2022
        %v2024 = vmul.f32 %v1955, 1.442695
        %v2025 = vpow.pop %v2024
        %v2026 = vmul.f32 %v1956, 1.442695
        %v2027 = vpow.pop %v2026
        %v2028 = vmul.f32 %v1957, 1.442695
        %v2029 = vpow.pop %v2028
        %v2030 = vmul.f32 %v1958, 1.442695
        %v2031 = vpow.pop %v2030
        %v2032 = vmul.f32 %v1959, 1.442695
        %v2033 = vpow.pop %v2032
        %v2034 = vmul.f32 %v1960, 1.442695
        %v2035 = vpow.pop %v2034
        %v2036 = vmul.f32 %v1961, 1.442695
        %v2037 = vpow.pop %v2036
        %v2038 = vmul.f32 %v1962, 1.442695
        %v2039 = vpow.pop %v2038
        %v2040 = vmul.f32 %v1963, 1.442695
        %v2041 = vpow.pop %v2040
        %v2042 = vmul.f32 %v1964, 1.442695
        %v2043 = vpow.pop %v2042
        %v2044 = vmul.f32 %v1965, 1.442695
        %v2045 = vpow.pop %v2044
        %v2046 = vmul.f32 %v1966, 1.442695
        %v2047 = vpow.pop %v2046
        %v2048 = vmul.f32 %v1967, 1.442695
        %v2049 = vpow.pop %v2048
        %v2050 = vmul.f32 %v1968, 1.442695
        %v2051 = vpow.pop %v2050
        %v2052 = vmul.f32 %v1969, 1.442695
        %v2053 = vpow.pop %v2052
        %v2054 = vmul.f32 %v1970, 1.442695
        %v2055 = vpow.pop %v2054
        %v2056 = vmul.f32 %v1971, 1.442695
        %v2057 = vpow.pop %v2056
        %v2058 = vmul.f32 %v1972, 1.442695
        %v2059 = vpow.pop %v2058
        %v2060 = vmul.f32 %v1973, 1.442695
        %v2061 = vpow.pop %v2060
        %v2062 = vmul.f32 %v1974, 1.442695
        %v2063 = vpow.pop %v2062
        %v2064 = vmul.f32 %v1975, 1.442695
        %v2065 = vpow.pop %v2064
        %v2066 = vmul.f32 %v1976, 1.442695
        %v2067 = vpow.pop %v2066
        %v2068 = vmul.f32 %v1977, 1.442695
        %v2069 = vpow.pop %v2068
        %v2070 = vmul.f32 %v1978, 1.442695
        %v2071 = vpow.pop %v2070
        %v2072 = vmul.f32 %v1979, 1.442695
        %v2073 = vpow.pop %v2072
        %v2074 = vmul.f32 %v1980, 1.442695
        %v2075 = vpow.pop %v2074
        %v2076 = vmul.f32 %v1981, 1.442695
        %v2077 = vpow.pop %v2076
        %v2078 = vmul.f32 %v1982, 1.442695
        %v2079 = vpow.pop %v2078
        %v2080 = vmul.f32 %v1983, 1.442695
        %v2081 = vpow.pop %v2080
        %v2082 = vmul.f32 %v1984, 1.442695
        %v2083 = vpow.pop %v2082
        %v2084 = vmul.f32 %v1985, 1.442695
        %v2085 = vpow.pop %v2084
        %v2086 = vmul.f32 %v1986, 1.442695
        %v2087 = vpow.pop %v2086
        %v2088 = vmul.f32 %v1987, 1.442695
        %v2089 = vpow.pop %v2088
        %v2090 = vmul.f32 %v1988, 1.442695
        %v2091 = vpow.pop %v2090
        %v2092 = vmul.f32 %v1989, 1.442695
        %v2093 = vpow.pop %v2092
        %v2094 = vmul.f32 %v1990, 1.442695
        %v2095 = vpow.pop %v2094
        %v2096 = vmul.f32 %v1991, 1.442695
        %v2097 = vpow.pop %v2096
        %v2098 = vmul.f32 %v1992, 1.442695
        %v2099 = vpow.pop %v2098
        %v2100 = vmul.f32 %v1993, 1.442695
        %v2101 = vpow.pop %v2100
        %v2102 = vmul.f32 %v1994, 1.442695
        %v2103 = vpow.pop %v2102
        %v2104 = vmul.f32 %v1995, 1.442695
        %v2105 = vpow.pop %v2104
        %v2106 = vmul.f32 %v1996, 1.442695
        %v2107 = vpow.pop %v2106
        %v2108 = vmul.f32 %v1997, 1.442695
        %v2109 = vpow.pop %v2108
        %v2110 = vmul.f32 %v1998, 1.442695
        %v2111 = vpow.pop %v2110
        %v2112 = vmul.f32 %v1999, 1.442695
        %v2113 = vpow.pop %v2112
        %v2114 = vmul.f32 %v2000, 1.442695
        %v2115 = vpow.pop %v2114
        %v2116 = vmul.f32 %v2001, 1.442695
        %v2117 = vpow.pop %v2116
        %v2118 = vmul.f32 %v2002, 1.442695
        %v2119 = vpow.pop %v2118
        %v2120 = vmul.f32 %v2003, 1.442695
        %v2121 = vpow.pop %v2120
        %v2122 = vmul.f32 %v2004, 1.442695
        %v2123 = vpow.pop %v2122
        %v2124 = vmul.f32 %v2005, 1.442695
        %v2125 = vpow.pop %v2124
        %v2126 = vmul.f32 %v2006, 1.442695
        %v2127 = vpow.pop %v2126
        %v2128 = vmul.f32 %v2007, 1.442695
        %v2129 = vpow.pop %v2128
        %v2130 = vmul.f32 %v2008, 1.442695
        %v2131 = vpow.pop %v2130
        %v2132 = vmul.f32 %v2009, 1.442695
        %v2133 = vpow.pop %v2132
        %v2134 = vmul.f32 %v2010, 1.442695
        %v2135 = vpow.pop %v2134
        %v2136 = vmul.f32 %v2011, 1.442695
        %v2137 = vpow.pop %v2136
        %v2138 = vmul.f32 %v2012, 1.442695
        %v2139 = vpow.pop %v2138
        %v2140 = vmul.f32 %v2013, 1.442695
        %v2141 = vpow.pop %v2140
        %2142 = vmatpush.xpose.msra.mxu0 %v2075
        %2143 = vmatpush.xpose.msra.mxu0 %v2071
        %2144 = vmatpush.xpose.msra.mxu0 %v2067
        %2145 = vmatpush.xpose.msra.mxu0 %v2063
        %2146 = vmatpush.xpose.msra.mxu0 %v2059
        %2147 = vmatpush.xpose.msra.mxu0 %v2055
        %2148 = vmatpush.xpose.msra.mxu0 %v2051
        %2149 = vmatpush.xpose.msra.mxu0 %v2047
        %2150 = vmatpush.xpose.msra.mxu0 %v2043
        %2151 = vmatpush.xpose.msra.mxu0 %v2039
        %2152 = vmatpush.xpose.msra.mxu0 %v2035
        %2153 = vmatpush.xpose.msra.mxu0 %v2031
        %2154 = vmatpush.xpose.msra.mxu0 %v2027
        %2155 = vmatpush.xpose.msra.mxu0 %v2023
        %2156 = vmatpush.xpose.msra.mxu0 %v2019
        %2157 = vmatpush.xpose.msra.mxu0 %v2015
        %2158 = vmatmul.f32.gmra.mxu0 %v1458
        %v2159 = vpop.f32.mrf.mxu0
        %v2160 = vadd.f32 0.0, %v2159
        %2161 = vmatmul.f32.gmra.mxu0 %v1460
        %v2162 = vpop.f32.mrf.mxu0
        %v2163 = vadd.f32 0.0, %v2162
        %2164 = vmatmul.f32.gmra.mxu0 %v1462
        %v2165 = vpop.f32.mrf.mxu0
        %v2166 = vadd.f32 0.0, %v2165
        %2167 = vmatmul.f32.gmra.mxu0 %v1464
        %v2168 = vpop.f32.mrf.mxu0
        %v2169 = vadd.f32 0.0, %v2168
        %2170 = vmatmul.f32.gmra.mxu0 %v1466
        %v2171 = vpop.f32.mrf.mxu0
        %v2172 = vadd.f32 0.0, %v2171
        %2173 = vdwg.mxu0
        %2174 = vmatpush.xpose.msra.mxu0 %v2077
        %2175 = vmatpush.xpose.msra.mxu0 %v2073
        %2176 = vmatpush.xpose.msra.mxu0 %v2069
        %2177 = vmatpush.xpose.msra.mxu0 %v2065
        %2178 = vmatpush.xpose.msra.mxu0 %v2061
        %2179 = vmatpush.xpose.msra.mxu0 %v2057
        %2180 = vmatpush.xpose.msra.mxu0 %v2053
        %2181 = vmatpush.xpose.msra.mxu0 %v2049
        %2182 = vmatpush.xpose.msra.mxu0 %v2045
        %2183 = vmatpush.xpose.msra.mxu0 %v2041
        %2184 = vmatpush.xpose.msra.mxu0 %v2037
        %2185 = vmatpush.xpose.msra.mxu0 %v2033
        %2186 = vmatpush.xpose.msra.mxu0 %v2029
        %2187 = vmatpush.xpose.msra.mxu0 %v2025
        %2188 = vmatpush.xpose.msra.mxu0 %v2021
        %2189 = vmatpush.xpose.msra.mxu0 %v2017
        %2190 = vmatmul.f32.gmra.mxu0 %v1459
        %v2191 = vpop.f32.mrf.mxu0
        %v2192 = vadd.f32 %v2160, %v2191
        %2193 = vmatmul.f32.gmra.mxu0 %v1461
        %v2194 = vpop.f32.mrf.mxu0
        %v2195 = vadd.f32 %v2163, %v2194
        %2196 = vmatmul.f32.gmra.mxu0 %v1463
        %v2197 = vpop.f32.mrf.mxu0
        %v2198 = vadd.f32 %v2166, %v2197
        %2199 = vmatmul.f32.gmra.mxu0 %v1465
        %v2200 = vpop.f32.mrf.mxu0
        %v2201 = vadd.f32 %v2169, %v2200
        %2202 = vmatmul.f32.gmra.mxu0 %v1467
        %v2203 = vpop.f32.mrf.mxu0
        %v2204 = vadd.f32 %v2172, %v2203
        %2205 = vdwg.mxu0
        %2206 = vmatpush.xpose.msra.mxu0 %v2139
        %2207 = vmatpush.xpose.msra.mxu0 %v2135
        %2208 = vmatpush.xpose.msra.mxu0 %v2131
        %2209 = vmatpush.xpose.msra.mxu0 %v2127
        %2210 = vmatpush.xpose.msra.mxu0 %v2123
        %2211 = vmatpush.xpose.msra.mxu0 %v2119
        %2212 = vmatpush.xpose.msra.mxu0 %v2115
        %2213 = vmatpush.xpose.msra.mxu0 %v2111
        %2214 = vmatpush.xpose.msra.mxu0 %v2107
        %2215 = vmatpush.xpose.msra.mxu0 %v2103
        %2216 = vmatpush.xpose.msra.mxu0 %v2099
        %2217 = vmatpush.xpose.msra.mxu0 %v2095
        %2218 = vmatpush.xpose.msra.mxu0 %v2091
        %2219 = vmatpush.xpose.msra.mxu0 %v2087
        %2220 = vmatpush.xpose.msra.mxu0 %v2083
        %2221 = vmatpush.xpose.msra.mxu0 %v2079
        %2222 = vmatmul.f32.gmra.mxu0 %v1458
        %v2223 = vpop.f32.mrf.mxu0
        %v2224 = vadd.f32 0.0, %v2223
        %2225 = vmatmul.f32.gmra.mxu0 %v1460
        %v2226 = vpop.f32.mrf.mxu0
        %v2227 = vadd.f32 0.0, %v2226
        %2228 = vmatmul.f32.gmra.mxu0 %v1462
        %v2229 = vpop.f32.mrf.mxu0
        %v2230 = vadd.f32 0.0, %v2229
        %2231 = vmatmul.f32.gmra.mxu0 %v1464
        %v2232 = vpop.f32.mrf.mxu0
        %v2233 = vadd.f32 0.0, %v2232
        %2234 = vmatmul.f32.gmra.mxu0 %v1466
        %v2235 = vpop.f32.mrf.mxu0
        %v2236 = vadd.f32 0.0, %v2235
        %2237 = vdwg.mxu0
        %2238 = vmatpush.xpose.msra.mxu0 %v2141
        %2239 = vmatpush.xpose.msra.mxu0 %v2137
        %2240 = vmatpush.xpose.msra.mxu0 %v2133
        %2241 = vmatpush.xpose.msra.mxu0 %v2129
        %2242 = vmatpush.xpose.msra.mxu0 %v2125
        %2243 = vmatpush.xpose.msra.mxu0 %v2121
        %2244 = vmatpush.xpose.msra.mxu0 %v2117
        %2245 = vmatpush.xpose.msra.mxu0 %v2113
        %2246 = vmatpush.xpose.msra.mxu0 %v2109
        %2247 = vmatpush.xpose.msra.mxu0 %v2105
        %2248 = vmatpush.xpose.msra.mxu0 %v2101
        %2249 = vmatpush.xpose.msra.mxu0 %v2097
        %2250 = vmatpush.xpose.msra.mxu0 %v2093
        %2251 = vmatpush.xpose.msra.mxu0 %v2089
        %2252 = vmatpush.xpose.msra.mxu0 %v2085
        %2253 = vmatpush.xpose.msra.mxu0 %v2081
        %2254 = vmatmul.f32.gmra.mxu0 %v1459
        %v2255 = vpop.f32.mrf.mxu0
        %v2256 = vadd.f32 %v2224, %v2255
        %2257 = vmatmul.f32.gmra.mxu0 %v1461
        %v2258 = vpop.f32.mrf.mxu0
        %v2259 = vadd.f32 %v2227, %v2258
        %2260 = vmatmul.f32.gmra.mxu0 %v1463
        %v2261 = vpop.f32.mrf.mxu0
        %v2262 = vadd.f32 %v2230, %v2261
        %2263 = vmatmul.f32.gmra.mxu0 %v1465
        %v2264 = vpop.f32.mrf.mxu0
        %v2265 = vadd.f32 %v2233, %v2264
        %2266 = vmatmul.f32.gmra.mxu0 %v1467
        %v2267 = vpop.f32.mrf.mxu0
        %v2268 = vadd.f32 %v2236, %v2267
        %2269 = vdwg.mxu0
        %v2270 = vrcp.pop %v2204
        %v2271 = vmul.f32 %v2204, %v2270
        %v2272 = vsub.f32 1.0, %v2271
        %v2273 = vmul.f32 %v2270, %v2272
        %v2274 = vadd.f32 %v2270, %v2273
        %vm2275 = vweird.f32 %v2204
        %vm2276 = vweird.f32 %v2270
        %vm2277 = vmor %vm2275, %vm2276
        %v2278 = vsel %vm2277, %v2270, %v2274
        %v2279 = vand.u32 2147483647, %v2204
        %vm2280 = vcmp.eq.f32.partialorder %v2279, 8.507059e+37
        %v2281 = vand.u32 %v2204, 2147483648
        %v2282 = vor.u32 1.1754944e-38, %v2281
        %v2283 = vsel %vm2280, %v2282, %v2278
        %v2284 = vrcp.pop %v2268
        %v2285 = vmul.f32 %v2268, %v2284
        %v2286 = vsub.f32 1.0, %v2285
        %v2287 = vmul.f32 %v2284, %v2286
        %v2288 = vadd.f32 %v2284, %v2287
        %vm2289 = vweird.f32 %v2268
        %vm2290 = vweird.f32 %v2284
        %vm2291 = vmor %vm2289, %vm2290
        %v2292 = vsel %vm2291, %v2284, %v2288
        %v2293 = vand.u32 2147483647, %v2268
        %vm2294 = vcmp.eq.f32.partialorder %v2293, 8.507059e+37
        %v2295 = vand.u32 %v2268, 2147483648
        %v2296 = vor.u32 1.1754944e-38, %v2295
        %v2297 = vsel %vm2294, %v2296, %v2292
        %v2298 = vperm.slane %v2283, 0
        %v2299 = vperm.slane %v2297, 0
        %v2300 = vmul.f32 %v2192, %v2298
        %v2301 = vmul.f32 %v2256, %v2299
        %v2302 = vmul.f32 %v2195, %v2298
        %v2303 = vmul.f32 %v2259, %v2299
        %v2304 = vmul.f32 %v2198, %v2298
        %v2305 = vmul.f32 %v2262, %v2299
        %v2306 = vmul.f32 %v2201, %v2298
        %v2307 = vmul.f32 %v2265, %v2299
        %2308 = vst [vmem:[%s448] sm:$0xff] %v2300
        %2309 = vst [vmem:[%s448 + $0x8] sm:$0xff] %v2301
        %2310 = vst [vmem:[%s448 + $0x10] sm:$0xff] %v2302
        %2311 = vst [vmem:[%s448 + $0x18] sm:$0xff] %v2303
        %2312 = vst [vmem:[%s448 + $0x20] sm:$0xff] %v2304
        %2313 = vst [vmem:[%s448 + $0x28] sm:$0xff] %v2305
        %2314 = vst [vmem:[%s448 + $0x30] sm:$0xff] %v2306
        %2315 = vst [vmem:[%s448 + $0x38] sm:$0xff] %v2307
        %s2316 = sand.u32 %s202, 1
        %s2317 = scalar_lea.sflag [#allocation4], %s2316
        %s2318 = sand.u32 %s202, 1
        %s2319 = smul.addr %s2318, 64
        %s2320 = scalar_lea.vmem [#allocation10], %s2319
        %s2321 = sand.u32 %s230, 1
        %s2322 = scalar_lea.sflag [#allocation12], %s2321
        %s2323 = sand.u32 %s230, 1
        %s2324 = smul.addr %s2323, 64
        %s2325 = scalar_lea.vmem [#allocation11], %s2324
        // Predicated region
        $region61: #{tpu_custom_call.1} parent=43 // pred_check
          %p2326 = pneg %p212
        $region62: #{tpu_custom_call.1} parent=43 // pred_check_branch
          %2328 = sbr.rel (%p2326) target = $region64
        $region63: #{tpu_custom_call.1} parent=43 // pred_region
          %s2329 = smul.u32 2, %s39
          %2331 = vsyncadd %s2317, 0
          %s2332 = smul.addr %s38, 8
          %s2333 = sadd.s32 %s2329, %s2332
          %s2334 = smul.addr %s2333, 8
          %s2335 = scalar_lea.hbm %s6, %s2334
          %s2336 = sshll.u32 %s2320, 4
          %s2337 = int_to_ptr.vmem [resolvable:$true] %s2336
          %s2338 = sshll.u32 %s2335, 4
          %s2339 = int_to_ptr.hbm [resolvable:$true] %s2338
          %2344 = dma.vmem_to_hbm [thread:$0]  %s2337, 1024, %s2339, %s2317, 256, 256, 16
        $region64: #{tpu_custom_call.1} parent=43 // pred_fallthru
          _
        // Predicated region
        $region65: #{tpu_custom_call.1} parent=43 // pred_check
          %p2345 = pneg %p240
        $region66: #{tpu_custom_call.1} parent=43 // pred_check_branch
          %2347 = sbr.rel (%p2345) target = $region68
        $region67: #{tpu_custom_call.1} parent=43 // pred_region
          %s2348 = smul.u32 2, %s39
          %2350 = vsyncadd %s2322, 0
          %s2351 = smul.addr %s38, 8
          %s2352 = sadd.s32 %s2348, %s2351
          %s2353 = smul.addr %s2352, 8
          %s2354 = scalar_lea.hbm %s7, %s2353
          %s2355 = sshll.u32 %s2325, 4
          %s2356 = int_to_ptr.vmem [resolvable:$true] %s2355
          %s2357 = sshll.u32 %s2354, 4
          %s2358 = int_to_ptr.hbm [resolvable:$true] %s2357
          %2363 = dma.vmem_to_hbm [thread:$0]  %s2356, 1024, %s2358, %s2322, 256, 256, 16
        $region68: #{tpu_custom_call.1} parent=43 // pred_fallthru
          _
      $region44: #{tpu_custom_call.1} parent=5 // pred_fallthru
        _
      %p2364 = scmp.le.s32.totalorder 2, %s29
      // Predicated region
      $region69: #{tpu_custom_call.1} parent=5 // pred_check
        %p2365 = pneg %p2364
      $region70: #{tpu_custom_call.1} parent=5 // pred_check_branch
        %2367 = sbr.rel (%p2365) target = $region72
      $region71: #{tpu_custom_call.1} parent=5 // pred_region
        %s2368 = ssub.s32 %s29, 2
        // Predicated region
        $region73: #{tpu_custom_call.1} parent=71 // pred_check
          %p2369 = pneg %p218
        $region74: #{tpu_custom_call.1} parent=71 // pred_check_branch
          %2371 = sbr.rel (%p2369) target = $region76
        $region75: #{tpu_custom_call.1} parent=71 // pred_region
          %s2372 = sand.u32 %s203, 1
          %s2373 = scalar_lea.sflag [#allocation4], %s2372
          %s2374 = sand.u32 %s203, 1
          %s2375 = smul.addr %s2374, 64
          %s2376 = scalar_lea.vmem [#allocation10], %s2375
          %2378 = dma.done %s2373, 1024
        $region76: #{tpu_custom_call.1} parent=71 // pred_fallthru
          _
        // Predicated region
        $region77: #{tpu_custom_call.1} parent=71 // pred_check
          %p2379 = pneg %p246
        $region78: #{tpu_custom_call.1} parent=71 // pred_check_branch
          %2381 = sbr.rel (%p2379) target = $region80
        $region79: #{tpu_custom_call.1} parent=71 // pred_region
          %s2382 = sand.u32 %s231, 1
          %s2383 = scalar_lea.sflag [#allocation12], %s2382
          %s2384 = sand.u32 %s231, 1
          %s2385 = smul.addr %s2384, 64
          %s2386 = scalar_lea.vmem [#allocation11], %s2385
          %2388 = dma.done %s2383, 1024
        $region80: #{tpu_custom_call.1} parent=71 // pred_fallthru
          _
      $region72: #{tpu_custom_call.1} parent=5 // pred_fallthru
        _
    $region6: #{tpu_custom_call.1} parent=1 // loop_footer
      %s33 = sadd.s32 1, %s29
    $region7: #{tpu_custom_call.1} parent=1 // loop_footer_branch
      %28 = sbr.rel target = $region3
    $region8: #{tpu_custom_call.1} parent=1 // loop_exit
      _
    %2389 = vsyncpa [#allocation3], 1
    %s2390 = scalar_lea.sflag [#allocation3], 1
    %2391 = vsyncpa %s2390, 1
    %2392 = vsyncpa [#allocation6], 1
    %s2393 = scalar_lea.sflag [#allocation6], 1
    %2394 = vsyncpa %s2393, 1
    %2395 = vsyncpa [#allocation9], 1
    %s2396 = scalar_lea.sflag [#allocation9], 1
    %2397 = vsyncpa %s2396, 1
    %2398 = vsyncpa [#allocation4], 1
    %s2399 = scalar_lea.sflag [#allocation4], 1
    %2400 = vsyncpa %s2399, 1
    %2401 = vsyncpa [#allocation12], 1
    %s2402 = scalar_lea.sflag [#allocation12], 1
    %2403 = vsyncpa %s2402, 1

</llo_original>
